<compile_context>
chip_gen: v7x
topology: tpu7x:2x2x1
jax: 0.10.0
libtpu: 0.0.40
codegen_flags: <defaults>
</compile_context>

<pallas_src>
import jax
import jax.numpy as jnp
from jax.experimental import pallas as pl
from jax.experimental.pallas import tpu as pltpu

PART = 6            # PCB number of horizontal parts
FEAT_DIM = 2048     # ResNet-50 layer4 channel count
BOTTLENECK = 256    # ClassBlock num_bottleneck in PCB
BN_EPS = 1e-5       # nn.BatchNorm1d default eps


def pcb_head_kernel(x_ref, w1_ref, b1_ref, w2_ref, b2_ref, out_ref):
    # x_ref: (B_TILE, hpw, C) bf16 — this part's spatial stripe for one batch tile,
    # channels on the lane axis.
    # AdaptiveAvgPool2d((6,1)) for this part == mean over its hpw spatial positions;
    # the 1/hpw scale is pre-folded into w1, so this is a pure sublane sum with f32
    # accumulation.
    pooled = jnp.sum(x_ref[...].astype(jnp.float32), axis=1)            # (B_TILE, C) f32

    # Dropout layers are identity in eval mode.

    # Linear(2048 -> 256) with BatchNorm1d(eval) and the pooling scale pre-folded
    # into w1/b1. bf16 operands on the MXU, f32 accumulation; bias add in f32 (VPU).
    f = jnp.dot(pooled.astype(jnp.bfloat16), w1_ref[...],
                preferred_element_type=jnp.float32) + b1_ref[...]        # (B_TILE, 256)

    # Linear(256 -> class_num), output padded to a 128-lane-dense slab.
    out_ref[...] = jnp.dot(f.astype(jnp.bfloat16), w2_ref[...],
                           preferred_element_type=jnp.float32) + b2_ref[...]


def prepare_head_params(raw, pool_size):
    """Fold eval-mode BatchNorm AND the 1/pool_size mean scale into Linear1,
    cast matmul weights to bf16, pad the classifier output dim to a multiple
    of 128. pool_size = (H // PART) * W of the layer4 feature map."""
    scale = raw["gamma"] * jax.lax.rsqrt(raw["running_var"] + BN_EPS)      # (P, 256)
    w1f = raw["w1"] * scale[:, None, :] * (1.0 / float(pool_size))         # (P, 2048, 256)
    b1f = (raw["b1"] - raw["running_mean"]) * scale + raw["beta"]          # (P, 256)

    class_num = raw["w2"].shape[-1]
    cpad = ((class_num + 127) // 128) * 128
    w2p = jnp.zeros((PART, BOTTLENECK, cpad), jnp.float32)
    w2p = w2p.at[:, :, :class_num].set(raw["w2"])
    b2p = jnp.zeros((PART, 1, cpad), jnp.float32)
    b2p = b2p.at[:, :, :class_num].set(raw["b2"][:, None, :])

    return dict(
        w1=w1f.astype(jnp.bfloat16),              # (P, 2048, 256) bf16
        b1=b1f[:, None, :].astype(jnp.float32),   # (P, 1, 256)    f32
        w2=w2p.astype(jnp.bfloat16),              # (P, 256, cpad) bf16
        b2=b2p,                                   # (P, 1, cpad)   f32
    )


def _pick_b_tile(B, hpw):
    """Batch tile: <= 32 rows, x block <= ~4 MiB bf16, and either a multiple
    of 8 or the full batch (keeps the output store sublane-dense and
    satisfies the (8, 128) block constraint)."""
    bytes_per_row = hpw * FEAT_DIM * 2
    max_rows = max(1, (4 * 1024 * 1024) // bytes_per_row)
    bt = min(B, 32, max_rows)
    if bt >= 8:
        bt = (bt // 8) * 8
    if bt < 8 and bt < B:
        bt = min(B, 8)
    return bt


def pcb_head(feat_nhwc, head, class_num):
    """feat_nhwc: (B, H, W, 2048) layer4 feature map in NHWC, H % 6 == 0.
    Any float dtype; streamed to the kernel as bf16 (pass bf16 directly from
    the backbone to avoid the extra cast pass).
    Returns a list of PART logits arrays, each (B, class_num) f32."""
    B, H, W, C = feat_nhwc.shape
    assert C == FEAT_DIM and H % PART == 0
    hp = H // PART
    hpw = hp * W
    cpad = head["w2"].shape[-1]

    # Free view (no HBM round trip): (B, H, W, C) -> (B, PART, hpw, C).
    # The part axis is indexed by the BlockSpec, not transposed in the wrapper.
    x = feat_nhwc.reshape(B, PART, hpw, C).astype(jnp.bfloat16)

    bt = _pick_b_tile(B, hpw)
    nb = pl.cdiv(B, bt)

    # Right-sized VMEM limit: double-buffered footprint + headroom, capped at
    # 64 MiB (v7x physical VMEM).
    x_bytes = bt * hpw * FEAT_DIM * 2
    w_bytes = FEAT_DIM * BOTTLENECK * 2 + BOTTLENECK * cpad * 2
    bias_bytes = (BOTTLENECK + cpad) * 4
    out_bytes = bt * cpad * 4
    vmem_limit = 2 * (x_bytes + w_bytes + bias_bytes + out_bytes) + (8 << 20)
    vmem_limit = min(max(vmem_limit, 16 << 20), 64 << 20)

    out = pl.pallas_call(
        pcb_head_kernel,
        out_shape=jax.ShapeDtypeStruct((PART, B, cpad), jnp.float32),
        grid_spec=pltpu.PrefetchScalarGridSpec(
            num_scalar_prefetch=0,
            # Parts outer, batch tiles inner: the per-part weights keep the
            # same block index across the inner batch axis, so they are not
            # re-fetched every step.
            grid=(PART, nb),
            in_specs=[
                pl.BlockSpec((bt, None, hpw, C), lambda p, b: (b, p, 0, 0)),
                pl.BlockSpec((None, FEAT_DIM, BOTTLENECK), lambda p, b: (p, 0, 0)),
                pl.BlockSpec((None, 1, BOTTLENECK), lambda p, b: (p, 0, 0)),
                pl.BlockSpec((None, BOTTLENECK, cpad), lambda p, b: (p, 0, 0)),
                pl.BlockSpec((None, 1, cpad), lambda p, b: (p, 0, 0)),
            ],
            out_specs=pl.BlockSpec((None, bt, cpad), lambda p, b: (p, b, 0)),
        ),
        compiler_params=pltpu.CompilerParams(
            dimension_semantics=("parallel", "parallel"),
            vmem_limit_bytes=vmem_limit,
        ),
    )(x, head["w1"], head["b1"], head["w2"], head["b2"])

    return [out[p, :, :class_num] for p in range(PART)]


def init_params(key, class_num):
    """Deterministic init mirroring weights_init_kaiming / weights_init_classifier,
    stacked over the 6 per-part ClassBlocks."""
    k1, k2, k3 = jax.random.split(key, 3)
    # Linear(2048, 256): kaiming_normal_, mode='fan_out' -> std = sqrt(2 / 256)
    w1 = jax.random.normal(k1, (PART, FEAT_DIM, BOTTLENECK), jnp.float32) * jnp.sqrt(
        2.0 / BOTTLENECK)
    b1 = jnp.zeros((PART, BOTTLENECK), jnp.float32)
    # BatchNorm1d(256): weight ~ N(1.0, 0.02), bias = 0, default running stats
    gamma = 1.0 + 0.02 * jax.random.normal(k2, (PART, BOTTLENECK), jnp.float32)
    beta = jnp.zeros((PART, BOTTLENECK), jnp.float32)
    running_mean = jnp.zeros((PART, BOTTLENECK), jnp.float32)
    running_var = jnp.ones((PART, BOTTLENECK), jnp.float32)
    # Linear(256, class_num): weight ~ N(0, 0.001), bias = 0
    w2 = 0.001 * jax.random.normal(k3, (PART, BOTTLENECK, class_num), jnp.float32)
    b2 = jnp.zeros((PART, class_num), jnp.float32)
    return dict(w1=w1, b1=b1, gamma=gamma, beta=beta,
                running_mean=running_mean, running_var=running_var,
                w2=w2, b2=b2)


if __name__ == "__main__":
    key = jax.random.PRNGKey(0)
    k_feat, k_param = jax.random.split(key)

    B, H, W = 2, 12, 4          # small synthetic layer4 feature map; H % 6 == 0
    class_num = 16
    hp = H // PART
    pool_size = hp * W

    # NHWC layer4 feature map (the backbone would ideally emit NHWC bf16 directly).
    feat = jax.random.normal(k_feat, (B, H, W, FEAT_DIM), jnp.float32)
    raw = init_params(k_param, class_num)
    head = prepare_head_params(raw, pool_size)

    logits_list = pcb_head(feat, head, class_num)
    logits_list = jax.block_until_ready(logits_list)
    assert len(logits_list) == PART
    assert all(o.shape == (B, class_num) for o in logits_list)

    # Plain-JAX f32 reference of the same head (unfolded BN, unfolded mean), per part.
    pooled_ref = feat.reshape(B, PART, hp, W, FEAT_DIM).mean(axis=(2, 3))  # (B, 6, 2048)
    for p in range(PART):
        part = pooled_ref[:, p]                                            # (B, 2048)
        f = part @ raw["w1"][p] + raw["b1"][p]
        f = (f - raw["running_mean"][p]) / jnp.sqrt(
            raw["running_var"][p] + BN_EPS) * raw["gamma"][p] + raw["beta"][p]
        ref = f @ raw["w2"][p] + raw["b2"][p]
        assert jnp.allclose(logits_list[p], ref, atol=1e-2, rtol=5e-2), (
            f"part {p} mismatch: max abs err "
            f"{jnp.max(jnp.abs(logits_list[p] - ref))}")

    print("KERNEL_OK")
</pallas_src>

<mosaic_0001>
module attributes {stable_mosaic.version = 11 : i64} {
  func.func @pcb_head_kernel(%arg0: i32, %arg1: i32, %arg2: memref<2x1x8x2048xbf16, #tpu.memory_space<vmem>>, %arg3: memref<1x2048x256xbf16, #tpu.memory_space<vmem>>, %arg4: memref<1x1x256xf32, #tpu.memory_space<vmem>>, %arg5: memref<1x256x128xbf16, #tpu.memory_space<vmem>>, %arg6: memref<1x1x128xf32, #tpu.memory_space<vmem>>, %arg7: memref<1x2x128xf32, #tpu.memory_space<vmem>>) attributes {dimension_semantics = [#tpu.dimension_semantics<parallel>, #tpu.dimension_semantics<parallel>], iteration_bounds = array<i64: 6, 1>, scalar_prefetch = 0 : i64, scratch_operands = 0 : i64, tpu.core_type = #tpu.core_type<tc>, window_params = [{transform_indices = @transform_0, window_bounds = array<i64: 2, 1, 8, 2048>}, {transform_indices = @transform_1, window_bounds = array<i64: 1, 2048, 256>}, {transform_indices = @transform_2, window_bounds = array<i64: 1, 1, 256>}, {transform_indices = @transform_3, window_bounds = array<i64: 1, 256, 128>}, {transform_indices = @transform_4, window_bounds = array<i64: 1, 1, 128>}, {transform_indices = @transform_5, window_bounds = array<i64: 1, 2, 128>}]} {
    %c0 = arith.constant 0 : index
    %c0_0 = arith.constant 0 : index
    %c0_1 = arith.constant 0 : index
    %c0_2 = arith.constant 0 : index
    %0 = vector.load %arg2[%c0, %c0_0, %c0_1, %c0_2] : memref<2x1x8x2048xbf16, #tpu.memory_space<vmem>>, vector<2x1x8x2048xbf16>
    %1 = vector.shape_cast %0 : vector<2x1x8x2048xbf16> to vector<2x8x2048xbf16>
    %2 = arith.extf %1 : vector<2x8x2048xbf16> to vector<2x8x2048xf32>
    %cst = arith.constant dense<0.000000e+00> : vector<2x2048xf32>
    %3 = vector.multi_reduction <add>, %2, %cst [1] : vector<2x8x2048xf32> to vector<2x2048xf32>
    %4 = arith.truncf %3 : vector<2x2048xf32> to vector<2x2048xbf16>
    %c0_3 = arith.constant 0 : index
    %c0_4 = arith.constant 0 : index
    %c0_5 = arith.constant 0 : index
    %5 = vector.load %arg3[%c0_3, %c0_4, %c0_5] : memref<1x2048x256xbf16, #tpu.memory_space<vmem>>, vector<1x2048x256xbf16>
    %6 = vector.shape_cast %5 : vector<1x2048x256xbf16> to vector<2048x256xbf16>
    %cst_6 = arith.constant dense<0.000000e+00> : vector<2x256xf32>
    %7 = tpu.matmul %4, %6, %cst_6 {dimension_numbers = #tpu.dot_dimension_numbers<[1], [0], [0], [1], [0, 0, 1, 1], [], []>} : vector<2x2048xbf16>, vector<2048x256xbf16>, vector<2x256xf32> -> vector<2x256xf32>
    %c0_7 = arith.constant 0 : index
    %c0_8 = arith.constant 0 : index
    %c0_9 = arith.constant 0 : index
    %8 = vector.load %arg4[%c0_7, %c0_8, %c0_9] : memref<1x1x256xf32, #tpu.memory_space<vmem>>, vector<1x1x256xf32>
    %9 = vector.shape_cast %8 : vector<1x1x256xf32> to vector<1x256xf32>
    %10 = vector.broadcast %9 : vector<1x256xf32> to vector<2x256xf32>
    %11 = arith.addf %7, %10 : vector<2x256xf32>
    %12 = arith.truncf %11 : vector<2x256xf32> to vector<2x256xbf16>
    %c0_10 = arith.constant 0 : index
    %c0_11 = arith.constant 0 : index
    %c0_12 = arith.constant 0 : index
    %13 = vector.load %arg5[%c0_10, %c0_11, %c0_12] : memref<1x256x128xbf16, #tpu.memory_space<vmem>>, vector<1x256x128xbf16>
    %14 = vector.shape_cast %13 : vector<1x256x128xbf16> to vector<256x128xbf16>
    %cst_13 = arith.constant dense<0.000000e+00> : vector<2x128xf32>
    %15 = tpu.matmul %12, %14, %cst_13 {dimension_numbers = #tpu.dot_dimension_numbers<[1], [0], [0], [1], [0, 0, 1, 1], [], []>} : vector<2x256xbf16>, vector<256x128xbf16>, vector<2x128xf32> -> vector<2x128xf32>
    %c0_14 = arith.constant 0 : index
    %c0_15 = arith.constant 0 : index
    %c0_16 = arith.constant 0 : index
    %16 = vector.load %arg6[%c0_14, %c0_15, %c0_16] : memref<1x1x128xf32, #tpu.memory_space<vmem>>, vector<1x1x128xf32>
    %17 = vector.shape_cast %16 : vector<1x1x128xf32> to vector<1x128xf32>
    %18 = vector.broadcast %17 : vector<1x128xf32> to vector<2x128xf32>
    %19 = arith.addf %15, %18 : vector<2x128xf32>
    %c0_17 = arith.constant 0 : index
    %c0_18 = arith.constant 0 : index
    %c0_19 = arith.constant 0 : index
    %20 = vector.load %arg7[%c0_17, %c0_18, %c0_19] : memref<1x2x128xf32, #tpu.memory_space<vmem>>, vector<1x2x128xf32>
    %21 = vector.shape_cast %20 : vector<1x2x128xf32> to vector<2x128xf32>
    %22 = vector.shape_cast %19 : vector<2x128xf32> to vector<1x2x128xf32>
    tpu.vector_store %arg7[%c0_17, %c0_18, %c0_19], %22 {strides = array<i32>} : memref<1x2x128xf32, #tpu.memory_space<vmem>>, vector<1x2x128xf32>,
    return
  }
  func.func @transform_0(%arg0: i32, %arg1: i32) -> (i32, i32, i32, i32) {
    %c0_i32 = arith.constant 0 : i32
    %c0_i32_0 = arith.constant 0 : i32
    %c0_i32_1 = arith.constant 0 : i32
    return %arg1, %arg0, %c0_i32, %c0_i32_0 : i32, i32, i32, i32
  }
  func.func @transform_1(%arg0: i32, %arg1: i32) -> (i32, i32, i32) {
    %c0_i32 = arith.constant 0 : i32
    %c0_i32_0 = arith.constant 0 : i32
    %c0_i32_1 = arith.constant 0 : i32
    return %arg0, %c0_i32, %c0_i32_0 : i32, i32, i32
  }
  func.func @transform_2(%arg0: i32, %arg1: i32) -> (i32, i32, i32) {
    %c0_i32 = arith.constant 0 : i32
    %c0_i32_0 = arith.constant 0 : i32
    %c0_i32_1 = arith.constant 0 : i32
    return %arg0, %c0_i32, %c0_i32_0 : i32, i32, i32
  }
  func.func @transform_3(%arg0: i32, %arg1: i32) -> (i32, i32, i32) {
    %c0_i32 = arith.constant 0 : i32
    %c0_i32_0 = arith.constant 0 : i32
    %c0_i32_1 = arith.constant 0 : i32
    return %arg0, %c0_i32, %c0_i32_0 : i32, i32, i32
  }
  func.func @transform_4(%arg0: i32, %arg1: i32) -> (i32, i32, i32) {
    %c0_i32 = arith.constant 0 : i32
    %c0_i32_0 = arith.constant 0 : i32
    %c0_i32_1 = arith.constant 0 : i32
    return %arg0, %c0_i32, %c0_i32_0 : i32, i32, i32
  }
  func.func @transform_5(%arg0: i32, %arg1: i32) -> (i32, i32, i32) {
    %c0_i32 = arith.constant 0 : i32
    %c0_i32_0 = arith.constant 0 : i32
    return %arg0, %arg1, %c0_i32 : i32, i32, i32
  }
}

</mosaic_0001>

<llo_original>
// kernel: tpu_custom_call.1
$region0: #{tpu_custom_call.1}
  #allocation0 [shape = 'u32[]', space=smem, size = 0x4, offset = 0x4, fixed_abs, tag = 'smem constant byte address 0x4 - core index']
  #allocation1 [shape = 'u32[144,128]{1,0:T(1,128)}', space=vmem, size = 0x12000, scoped, tag = 'internal scratch']
  %s0 = inlined_call_operand.hbm [shape: bf16[2,6,8,2048], index: 0, kind: input, shape index: {}]
  %s1 = inlined_call_operand.hbm [shape: bf16[6,2048,256], index: 1, kind: input, shape index: {}]
  %s2 = inlined_call_operand.hbm [shape: f32[6,1,256], index: 2, kind: input, shape index: {}]
  %s3 = inlined_call_operand.hbm [shape: bf16[6,256,128], index: 3, kind: input, shape index: {}]
  %s4 = inlined_call_operand.hbm [shape: f32[6,1,128], index: 4, kind: input, shape index: {}]
  %s5 = inlined_call_operand.hbm [shape: f32[6,2,128], index: 5, kind: output, shape index: {}]
  %s6 = sld [smem:[#allocation0]]
  $region73: #{tpu_custom_call.1} parent=0
    _
  %s8 = ssub.s32 1, %s6
  %s9 = scalar_select 0, %s8, %s6
  $region1: #{tpu_custom_call.1} parent=0
    #allocation2 [shape = 'u8[131072]{0}', space=vmem, size = 0x20000, scoped, tag = 'input window, operand 0']
    #allocation3 [shape = 's32[2]{0}', space=sflag, size = 0x8, scoped, tag = 'scoped memory for tpu_custom_call.1']
    #allocation4 [shape = 's32[2]{0}', space=sflag, size = 0x8, scoped, tag = 'scoped memory for tpu_custom_call.1']
    #allocation5 [shape = 'u8[2097152]{0}', space=vmem, size = 0x200000, scoped, tag = 'input window, operand 1']
    #allocation6 [shape = 's32[2]{0}', space=sflag, size = 0x8, scoped, tag = 'scoped memory for tpu_custom_call.1']
    #allocation7 [shape = 'u8[2048]{0}', space=vmem, size = 0x800, scoped, tag = 'input window, operand 2']
    #allocation8 [shape = 'u8[131072]{0}', space=vmem, size = 0x20000, scoped, tag = 'input window, operand 3']
    #allocation9 [shape = 's32[2]{0}', space=sflag, size = 0x8, scoped, tag = 'scoped memory for tpu_custom_call.1']
    #allocation10 [shape = 'u8[1024]{0}', space=vmem, size = 0x400, scoped, tag = 'input window, operand 4']
    #allocation11 [shape = 'u8[2048]{0}', space=vmem, size = 0x800, scoped, tag = 'output window, operand 0']
    %10 = vsyncpa [#allocation3], 0
    %s11 = scalar_lea.sflag [#allocation3], 1
    %12 = vsyncpa %s11, 0
    %13 = vsyncpa [#allocation6], 0
    %s14 = scalar_lea.sflag [#allocation6], 1
    %15 = vsyncpa %s14, 0
    %16 = vsyncpa [#allocation9], 0
    %s17 = scalar_lea.sflag [#allocation9], 1
    %18 = vsyncpa %s17, 0
    %19 = vsyncpa [#allocation4], 0
    %s20 = scalar_lea.sflag [#allocation4], 1
    %21 = vsyncpa %s20, 0
    loop: start=0, step=1, limit=8
    $region2: #{tpu_custom_call.1} parent=1 // loop_pre_header
      _
    $region3: #{tpu_custom_call.1} parent=1 // loop_header
      %s23 = sphi 0, %s27
      %p24 = scmp.ge.s32.totalorder %s23, 8
      %s30 = sphi 0, %s42
      %s31 = sphi 0, %s38
      %s32 = sphi 0, %s30
      %s33 = sphi 0, %s31
      %s34 = sphi 0, %s32
      %s35 = sphi 0, %s33
      %s47 = sphi 0, %s49
      %s50 = sphi 0, %s47
      %s51 = sphi 0, %s50
      %s67 = sphi 0, %s51
      %s73 = sphi 0, %s75
      %s76 = sphi 0, %s73
      %s77 = sphi 0, %s76
      %s93 = sphi 0, %s77
      %s99 = sphi 0, %s101
      %s102 = sphi 0, %s99
      %s103 = sphi 0, %s102
      %s119 = sphi 0, %s103
      %s125 = sphi 0, %s127
      %s128 = sphi 0, %s125
      %s129 = sphi 0, %s128
      %s145 = sphi 0, %s129
      %s151 = sphi 0, %s153
      %s154 = sphi 0, %s151
      %s155 = sphi 0, %s154
      %s171 = sphi 0, %s155
      %s179 = sphi 0, %s181
      %s182 = sphi 0, %s179
      %s183 = sphi 0, %s182
      %s199 = sphi 0, %s183
    $region4: #{tpu_custom_call.1} parent=1 // loop_header_branch
      %26 = sbr.rel (%p24) target = $region8
    $region5: #{tpu_custom_call.1} parent=1 // loop_body
      %s28 = ssub.s32 %s23, 1
      %s29 = ssub.s32 %s23, 2
      %s36 = sadd.s32 1, %s31
      %p37 = scmp.ge.s32.totalorder %s36, 1
      %s38 = scalar_select %p37, 0, %s36
      %s39 = sadd.s32 1, %s30
      %s40 = scalar_select %p37, %s39, %s30
      %p41 = scmp.ge.s32.totalorder %s40, 6
      %s42 = scalar_select %p41, 0, %s40
      %s43 = ssub.s32 %s31, %s38
      %s44 = ssub.s32 %s30, %s42
      %s45 = sor.u32 %s43, %s44
      %p46 = scmp.eq.s32.totalorder %s45, 0
      %s48 = sadd.s32 %s47, 1
      %s49 = scalar_select %p46, %s47, %s48
      %p52 = pneg %p46
      %p53 = scmp.eq.s32.totalorder %s23, 5
      %p54 = por %p52, %p53
      %p55 = scmp.ne.s32.totalorder %s47, %s50
      %p56 = scmp.eq.s32.totalorder %s23, 0
      %p57 = por %p55, %p56
      %p58 = scmp.ne.s32.totalorder %s47, %s50
      %p59 = scmp.eq.s32.totalorder %s28, 5
      %p60 = por %p58, %p59
      %p61 = scmp.ne.s32.totalorder %s50, %s51
      %p62 = scmp.eq.s32.totalorder %s28, 0
      %p63 = por %p61, %p62
      %p64 = scmp.ne.s32.totalorder %s50, %s51
      %p65 = scmp.eq.s32.totalorder %s29, 5
      %p66 = por %p64, %p65
      %p68 = scmp.ne.s32.totalorder %s51, %s67
      %p69 = scmp.eq.s32.totalorder %s29, 0
      %p70 = por %p68, %p69
      %s71 = ssub.s32 %s30, %s42
      %p72 = scmp.eq.s32.totalorder %s71, 0
      %s74 = sadd.s32 %s73, 1
      %s75 = scalar_select %p72, %s73, %s74
      %p78 = pneg %p72
      %p79 = scmp.eq.s32.totalorder %s23, 5
      %p80 = por %p78, %p79
      %p81 = scmp.ne.s32.totalorder %s73, %s76
      %p82 = scmp.eq.s32.totalorder %s23, 0
      %p83 = por %p81, %p82
      %p84 = scmp.ne.s32.totalorder %s73, %s76
      %p85 = scmp.eq.s32.totalorder %s28, 5
      %p86 = por %p84, %p85
      %p87 = scmp.ne.s32.totalorder %s76, %s77
      %p88 = scmp.eq.s32.totalorder %s28, 0
      %p89 = por %p87, %p88
      %p90 = scmp.ne.s32.totalorder %s76, %s77
      %p91 = scmp.eq.s32.totalorder %s29, 5
      %p92 = por %p90, %p91
      %p94 = scmp.ne.s32.totalorder %s77, %s93
      %p95 = scmp.eq.s32.totalorder %s29, 0
      %p96 = por %p94, %p95
      %s97 = ssub.s32 %s30, %s42
      %p98 = scmp.eq.s32.totalorder %s97, 0
      %s100 = sadd.s32 %s99, 1
      %s101 = scalar_select %p98, %s99, %s100
      %p104 = pneg %p98
      %p105 = scmp.eq.s32.totalorder %s23, 5
      %p106 = por %p104, %p105
      %p107 = scmp.ne.s32.totalorder %s99, %s102
      %p108 = scmp.eq.s32.totalorder %s23, 0
      %p109 = por %p107, %p108
      %p110 = scmp.ne.s32.totalorder %s99, %s102
      %p111 = scmp.eq.s32.totalorder %s28, 5
      %p112 = por %p110, %p111
      %p113 = scmp.ne.s32.totalorder %s102, %s103
      %p114 = scmp.eq.s32.totalorder %s28, 0
      %p115 = por %p113, %p114
      %p116 = scmp.ne.s32.totalorder %s102, %s103
      %p117 = scmp.eq.s32.totalorder %s29, 5
      %p118 = por %p116, %p117
      %p120 = scmp.ne.s32.totalorder %s103, %s119
      %p121 = scmp.eq.s32.totalorder %s29, 0
      %p122 = por %p120, %p121
      %s123 = ssub.s32 %s30, %s42
      %p124 = scmp.eq.s32.totalorder %s123, 0
      %s126 = sadd.s32 %s125, 1
      %s127 = scalar_select %p124, %s125, %s126
      %p130 = pneg %p124
      %p131 = scmp.eq.s32.totalorder %s23, 5
      %p132 = por %p130, %p131
      %p133 = scmp.ne.s32.totalorder %s125, %s128
      %p134 = scmp.eq.s32.totalorder %s23, 0
      %p135 = por %p133, %p134
      %p136 = scmp.ne.s32.totalorder %s125, %s128
      %p137 = scmp.eq.s32.totalorder %s28, 5
      %p138 = por %p136, %p137
      %p139 = scmp.ne.s32.totalorder %s128, %s129
      %p140 = scmp.eq.s32.totalorder %s28, 0
      %p141 = por %p139, %p140
      %p142 = scmp.ne.s32.totalorder %s128, %s129
      %p143 = scmp.eq.s32.totalorder %s29, 5
      %p144 = por %p142, %p143
      %p146 = scmp.ne.s32.totalorder %s129, %s145
      %p147 = scmp.eq.s32.totalorder %s29, 0
      %p148 = por %p146, %p147
      %s149 = ssub.s32 %s30, %s42
      %p150 = scmp.eq.s32.totalorder %s149, 0
      %s152 = sadd.s32 %s151, 1
      %s153 = scalar_select %p150, %s151, %s152
      %p156 = pneg %p150
      %p157 = scmp.eq.s32.totalorder %s23, 5
      %p158 = por %p156, %p157
      %p159 = scmp.ne.s32.totalorder %s151, %s154
      %p160 = scmp.eq.s32.totalorder %s23, 0
      %p161 = por %p159, %p160
      %p162 = scmp.ne.s32.totalorder %s151, %s154
      %p163 = scmp.eq.s32.totalorder %s28, 5
      %p164 = por %p162, %p163
      %p165 = scmp.ne.s32.totalorder %s154, %s155
      %p166 = scmp.eq.s32.totalorder %s28, 0
      %p167 = por %p165, %p166
      %p168 = scmp.ne.s32.totalorder %s154, %s155
      %p169 = scmp.eq.s32.totalorder %s29, 5
      %p170 = por %p168, %p169
      %p172 = scmp.ne.s32.totalorder %s155, %s171
      %p173 = scmp.eq.s32.totalorder %s29, 0
      %p174 = por %p172, %p173
      %s175 = ssub.s32 %s30, %s42
      %s176 = ssub.s32 %s31, %s38
      %s177 = sor.u32 %s175, %s176
      %p178 = scmp.eq.s32.totalorder %s177, 0
      %s180 = sadd.s32 %s179, 1
      %s181 = scalar_select %p178, %s179, %s180
      %p184 = pneg %p178
      %p185 = scmp.eq.s32.totalorder %s23, 5
      %p186 = por %p184, %p185
      %p187 = scmp.ne.s32.totalorder %s179, %s182
      %p188 = scmp.eq.s32.totalorder %s23, 0
      %p189 = por %p187, %p188
      %p190 = scmp.ne.s32.totalorder %s179, %s182
      %p191 = scmp.eq.s32.totalorder %s28, 5
      %p192 = por %p190, %p191
      %p193 = scmp.ne.s32.totalorder %s182, %s183
      %p194 = scmp.eq.s32.totalorder %s28, 0
      %p195 = por %p193, %p194
      %p196 = scmp.ne.s32.totalorder %s182, %s183
      %p197 = scmp.eq.s32.totalorder %s29, 5
      %p198 = por %p196, %p197
      %p200 = scmp.ne.s32.totalorder %s183, %s199
      %p201 = scmp.eq.s32.totalorder %s29, 0
      %p202 = por %p200, %p201
      %p203 = scmp.le.s32.totalorder 1, %s23
      %p204 = scmp.lt.s32.totalorder %s23, 7
      %p205 = pnand %p203, %p204
      %p206 = pneg %p205
      // Predicated region
      $region9: #{tpu_custom_call.1} parent=5 // pred_check
        _
      $region10: #{tpu_custom_call.1} parent=5 // pred_check_branch
        %208 = sbr.rel (%p205) target = $region12
      $region11: #{tpu_custom_call.1} parent=5 // pred_region
        %s209 = ssub.s32 %s23, 1
      $region12: #{tpu_custom_call.1} parent=5 // pred_fallthru
        _
      %p210 = scmp.lt.s32.totalorder %s23, 6
      // Predicated region
      $region13: #{tpu_custom_call.1} parent=5 // pred_check
        %p211 = pneg %p210
      $region14: #{tpu_custom_call.1} parent=5 // pred_check_branch
        %213 = sbr.rel (%p211) target = $region16
      $region15: #{tpu_custom_call.1} parent=5 // pred_region
        // Predicated region
        $region17: #{tpu_custom_call.1} parent=15 // pred_check
          %p214 = pneg %p57
        $region18: #{tpu_custom_call.1} parent=15 // pred_check_branch
          %216 = sbr.rel (%p214) target = $region20
        $region19: #{tpu_custom_call.1} parent=15 // pred_region
          %s217 = sand.u32 %s47, 1
          %s218 = scalar_lea.sflag [#allocation3], %s217
          %s219 = sand.u32 %s47, 1
          %s220 = smul.addr %s219, 128
          %s221 = scalar_lea.vmem [#allocation2], %s220
          %s222 = smul.u32 2, %s31
          %s224 = ssub.s32 2048, 2048
          %225 = vsyncadd %s218, %s224
          %s226 = smul.addr %s30, 16
          %s227 = smul.addr %s222, 96
          %s228 = sadd.s32 %s226, %s227
          %s229 = smul.addr %s228, 64
          %s230 = scalar_lea.hbm %s0, %s229
          %s231 = sshll.u32 %s221, 4
          %s232 = int_to_ptr.vmem [resolvable:$true] %s231
          %237 = dma.hbm_to_vmem [thread:$0]  %s230, 2048, %s232, %s218, 6144, 1024, 64
        $region20: #{tpu_custom_call.1} parent=15 // pred_fallthru
          _
        // Predicated region
        $region21: #{tpu_custom_call.1} parent=15 // pred_check
          %p238 = pneg %p83
        $region22: #{tpu_custom_call.1} parent=15 // pred_check_branch
          %240 = sbr.rel (%p238) target = $region24
        $region23: #{tpu_custom_call.1} parent=15 // pred_region
          %s241 = sand.u32 %s23, 1
          %s242 = scalar_lea.sflag [#allocation6], %s241
          %s243 = sand.u32 %s73, 1
          %s244 = smul.addr %s243, 2048
          %s245 = scalar_lea.vmem [#allocation5], %s244
          %s247 = ssub.s32 32768, 32768
          %248 = vsyncadd %s242, %s247
          %s249 = smul.addr %s30, 512
          %s250 = smul.addr %s249, 64
          %s251 = scalar_lea.hbm %s1, %s250
          %s252 = sshll.u32 %s245, 4
          %s253 = int_to_ptr.vmem [resolvable:$true] %s252
          %258 = dma.hbm_to_vmem [thread:$0]  %s251, 32768, %s253, %s242, 128, 128, 8
        $region24: #{tpu_custom_call.1} parent=15 // pred_fallthru
          _
        // Predicated region
        $region25: #{tpu_custom_call.1} parent=15 // pred_check
          %p259 = pneg %p109
        $region26: #{tpu_custom_call.1} parent=15 // pred_check_branch
          %261 = sbr.rel (%p259) target = $region28
        $region27: #{tpu_custom_call.1} parent=15 // pred_region
          %s262 = sand.u32 %s23, 1
          %s263 = scalar_lea.sflag [#allocation6], %s262
          %s264 = sand.u32 %s99, 1
          %s265 = smul.addr %s264, 2
          %s266 = scalar_lea.vmem [#allocation7], %s265
          %s268 = ssub.s32 32, 32
          %269 = vsyncadd %s263, %s268
          %s270 = smul.addr %s30, 2
          %s271 = smul.addr %s270, 16
          %s272 = scalar_lea.hbm %s2, %s271
          %s274 = sshll.u32 %s266, 4
          %s275 = int_to_ptr.vmem [resolvable:$true] %s274
          %277 = dma.hbm_to_vmem [thread:$0]  %s272, 32, %s275, %s263
        $region28: #{tpu_custom_call.1} parent=15 // pred_fallthru
          _
        // Predicated region
        $region29: #{tpu_custom_call.1} parent=15 // pred_check
          %p278 = pneg %p135
        $region30: #{tpu_custom_call.1} parent=15 // pred_check_branch
          %280 = sbr.rel (%p278) target = $region32
        $region31: #{tpu_custom_call.1} parent=15 // pred_region
          %s281 = sand.u32 %s23, 1
          %s282 = scalar_lea.sflag [#allocation9], %s281
          %s283 = sand.u32 %s125, 1
          %s284 = smul.addr %s283, 128
          %s285 = scalar_lea.vmem [#allocation8], %s284
          %s287 = ssub.s32 2048, 2048
          %288 = vsyncadd %s282, %s287
          %s289 = smul.addr %s30, 32
          %s290 = smul.addr %s289, 64
          %s291 = scalar_lea.hbm %s3, %s290
          %s292 = sshll.u32 %s285, 4
          %s293 = int_to_ptr.vmem [resolvable:$true] %s292
          %298 = dma.hbm_to_vmem [thread:$0]  %s291, 2048, %s293, %s282, 64, 64, 4
        $region32: #{tpu_custom_call.1} parent=15 // pred_fallthru
          _
        // Predicated region
        $region33: #{tpu_custom_call.1} parent=15 // pred_check
          %p299 = pneg %p161
        $region34: #{tpu_custom_call.1} parent=15 // pred_check_branch
          %301 = sbr.rel (%p299) target = $region36
        $region35: #{tpu_custom_call.1} parent=15 // pred_region
          %s302 = sand.u32 %s23, 1
          %s303 = scalar_lea.sflag [#allocation9], %s302
          %s304 = sand.u32 %s151, 1
          %s305 = scalar_lea.vmem [#allocation10], %s304
          %s307 = ssub.s32 16, 16
          %308 = vsyncadd %s303, %s307
          %s309 = smul.addr %s30, 16
          %s310 = scalar_lea.hbm %s4, %s309
          %s312 = sshll.u32 %s305, 4
          %s313 = int_to_ptr.vmem [resolvable:$true] %s312
          %315 = dma.hbm_to_vmem [thread:$0]  %s310, 16, %s313, %s303
        $region36: #{tpu_custom_call.1} parent=15 // pred_fallthru
          _
      $region16: #{tpu_custom_call.1} parent=5 // pred_fallthru
        _
      %p316 = scmp.le.s32.totalorder 1, %s23
      %p317 = scmp.lt.s32.totalorder %s23, 7
      %p318 = pnand %p316, %p317
      %p319 = pneg %p318
      // Predicated region
      $region37: #{tpu_custom_call.1} parent=5 // pred_check
        _
      $region38: #{tpu_custom_call.1} parent=5 // pred_check_branch
        %321 = sbr.rel (%p318) target = $region40
      $region39: #{tpu_custom_call.1} parent=5 // pred_region
        %s322 = ssub.s32 %s23, 1
        %s323 = sand.u32 %s50, 1
        %s324 = scalar_lea.sflag [#allocation3], %s323
        %s325 = sand.u32 %s50, 1
        %s326 = smul.addr %s325, 128
        %s327 = scalar_lea.vmem [#allocation2], %s326
        // Predicated region
        $region41: #{tpu_custom_call.1} parent=39 // pred_check
          %p328 = pneg %p63
        $region42: #{tpu_custom_call.1} parent=39 // pred_check_branch
          %330 = sbr.rel (%p328) target = $region44
        $region43: #{tpu_custom_call.1} parent=39 // pred_region
          %331 = dma.done %s324, 2048
        $region44: #{tpu_custom_call.1} parent=39 // pred_fallthru
          _
        %s332 = sand.u32 %s28, 1
        %s333 = scalar_lea.sflag [#allocation6], %s332
        %s334 = sand.u32 %s76, 1
        %s335 = smul.addr %s334, 2048
        %s336 = scalar_lea.vmem [#allocation5], %s335
        // Predicated region
        $region45: #{tpu_custom_call.1} parent=39 // pred_check
          %p337 = pneg %p89
        $region46: #{tpu_custom_call.1} parent=39 // pred_check_branch
          %339 = sbr.rel (%p337) target = $region48
        $region47: #{tpu_custom_call.1} parent=39 // pred_region
          %340 = dma.done %s333, 32768
        $region48: #{tpu_custom_call.1} parent=39 // pred_fallthru
          _
        %s341 = sand.u32 %s28, 1
        %s342 = scalar_lea.sflag [#allocation6], %s341
        %s343 = sand.u32 %s102, 1
        %s344 = smul.addr %s343, 2
        %s345 = scalar_lea.vmem [#allocation7], %s344
        // Predicated region
        $region49: #{tpu_custom_call.1} parent=39 // pred_check
          %p346 = pneg %p115
        $region50: #{tpu_custom_call.1} parent=39 // pred_check_branch
          %348 = sbr.rel (%p346) target = $region52
        $region51: #{tpu_custom_call.1} parent=39 // pred_region
          %349 = dma.done %s342, 32
        $region52: #{tpu_custom_call.1} parent=39 // pred_fallthru
          _
        %s350 = sand.u32 %s28, 1
        %s351 = scalar_lea.sflag [#allocation9], %s350
        %s352 = sand.u32 %s128, 1
        %s353 = smul.addr %s352, 128
        %s354 = scalar_lea.vmem [#allocation8], %s353
        // Predicated region
        $region53: #{tpu_custom_call.1} parent=39 // pred_check
          %p355 = pneg %p141
        $region54: #{tpu_custom_call.1} parent=39 // pred_check_branch
          %357 = sbr.rel (%p355) target = $region56
        $region55: #{tpu_custom_call.1} parent=39 // pred_region
          %358 = dma.done %s351, 2048
        $region56: #{tpu_custom_call.1} parent=39 // pred_fallthru
          _
        %s359 = sand.u32 %s28, 1
        %s360 = scalar_lea.sflag [#allocation9], %s359
        %s361 = sand.u32 %s154, 1
        %s362 = scalar_lea.vmem [#allocation10], %s361
        // Predicated region
        $region57: #{tpu_custom_call.1} parent=39 // pred_check
          %p363 = pneg %p167
        $region58: #{tpu_custom_call.1} parent=39 // pred_check_branch
          %365 = sbr.rel (%p363) target = $region60
        $region59: #{tpu_custom_call.1} parent=39 // pred_region
          %366 = dma.done %s360, 16
        $region60: #{tpu_custom_call.1} parent=39 // pred_fallthru
          _
        %s367 = sand.u32 %s50, 1
        %s368 = scalar_lea.sflag [#allocation3], %s367
        %s369 = sand.u32 %s50, 1
        %s370 = smul.addr %s369, 128
        %s371 = scalar_lea.vmem [#allocation2], %s370
        %p372 = pneg %p63
        %p373 = pneg %p60
        %s374 = sand.u32 %s28, 1
        %s375 = scalar_lea.sflag [#allocation6], %s374
        %s376 = sand.u32 %s76, 1
        %s377 = smul.addr %s376, 2048
        %s378 = scalar_lea.vmem [#allocation5], %s377
        %p379 = pneg %p89
        %p380 = pneg %p86
        %s381 = sand.u32 %s28, 1
        %s382 = scalar_lea.sflag [#allocation6], %s381
        %s383 = sand.u32 %s102, 1
        %s384 = smul.addr %s383, 2
        %s385 = scalar_lea.vmem [#allocation7], %s384
        %p386 = pneg %p115
        %p387 = pneg %p112
        %s388 = sand.u32 %s28, 1
        %s389 = scalar_lea.sflag [#allocation9], %s388
        %s390 = sand.u32 %s128, 1
        %s391 = smul.addr %s390, 128
        %s392 = scalar_lea.vmem [#allocation8], %s391
        %p393 = pneg %p141
        %p394 = pneg %p138
        %s395 = sand.u32 %s28, 1
        %s396 = scalar_lea.sflag [#allocation9], %s395
        %s397 = sand.u32 %s154, 1
        %s398 = scalar_lea.vmem [#allocation10], %s397
        %p399 = pneg %p167
        %p400 = pneg %p164
        %p401 = pneg %p195
        %p402 = pneg %p192
        %s403 = sand.u32 %s182, 1
        %s404 = scalar_lea.sflag [#allocation4], %s403
        %s405 = sand.u32 %s182, 1
        %s406 = smul.addr %s405, 2
        %s407 = scalar_lea.vmem [#allocation11], %s406
        %s408 = smul.u32 2, %s33
        %v410 = vld [vmem:[%s327] sm:$0xff]
        %v411 = vld [vmem:[%s327 + $0x8] sm:$0xff]
        %v412 = vld [vmem:[%s327 + $0x10] sm:$0xff]
        %v413 = vld [vmem:[%s327 + $0x18] sm:$0xff]
        %v414 = vld [vmem:[%s327 + $0x20] sm:$0xff]
        %v415 = vld [vmem:[%s327 + $0x28] sm:$0xff]
        %v416 = vld [vmem:[%s327 + $0x30] sm:$0xff]
        %v417 = vld [vmem:[%s327 + $0x38] sm:$0xff]
        %v418 = vld [vmem:[%s327 + $0x40] sm:$0xff]
        %v419 = vld [vmem:[%s327 + $0x48] sm:$0xff]
        %v420 = vld [vmem:[%s327 + $0x50] sm:$0xff]
        %v421 = vld [vmem:[%s327 + $0x58] sm:$0xff]
        %v422 = vld [vmem:[%s327 + $0x60] sm:$0xff]
        %v423 = vld [vmem:[%s327 + $0x68] sm:$0xff]
        %v424 = vld [vmem:[%s327 + $0x70] sm:$0xff]
        %v425 = vld [vmem:[%s327 + $0x78] sm:$0xff]
        %v426 = vunpack.c.l.bf16 %v410
        %v427 = vunpack.c.h.bf16 %v410
        %v428 = vunpack.c.l.bf16 %v411
        %v429 = vunpack.c.h.bf16 %v411
        %v430 = vunpack.c.l.bf16 %v412
        %v431 = vunpack.c.h.bf16 %v412
        %v432 = vunpack.c.l.bf16 %v413
        %v433 = vunpack.c.h.bf16 %v413
        %v434 = vunpack.c.l.bf16 %v414
        %v435 = vunpack.c.h.bf16 %v414
        %v436 = vunpack.c.l.bf16 %v415
        %v437 = vunpack.c.h.bf16 %v415
        %v438 = vunpack.c.l.bf16 %v416
        %v439 = vunpack.c.h.bf16 %v416
        %v440 = vunpack.c.l.bf16 %v417
        %v441 = vunpack.c.h.bf16 %v417
        %v442 = vunpack.c.l.bf16 %v418
        %v443 = vunpack.c.h.bf16 %v418
        %v444 = vunpack.c.l.bf16 %v419
        %v445 = vunpack.c.h.bf16 %v419
        %v446 = vunpack.c.l.bf16 %v420
        %v447 = vunpack.c.h.bf16 %v420
        %v448 = vunpack.c.l.bf16 %v421
        %v449 = vunpack.c.h.bf16 %v421
        %v450 = vunpack.c.l.bf16 %v422
        %v451 = vunpack.c.h.bf16 %v422
        %v452 = vunpack.c.l.bf16 %v423
        %v453 = vunpack.c.h.bf16 %v423
        %v454 = vunpack.c.l.bf16 %v424
        %v455 = vunpack.c.h.bf16 %v424
        %v456 = vunpack.c.l.bf16 %v425
        %v457 = vunpack.c.h.bf16 %v425
        %v458 = vrot.slane %v426, 4
        %v459 = vadd.f32 %v426, %v458
        %v460 = vrot.slane %v459, 2
        %v461 = vadd.f32 %v459, %v460
        %v462 = vrot.slane %v461, 1
        %v463 = vadd.f32 %v461, %v462
        %v464 = vrot.slane %v427, 4
        %v465 = vadd.f32 %v427, %v464
        %v466 = vrot.slane %v465, 2
        %v467 = vadd.f32 %v465, %v466
        %v468 = vrot.slane %v467, 1
        %v469 = vadd.f32 %v467, %v468
        %v470 = vrot.slane %v428, 4
        %v471 = vadd.f32 %v428, %v470
        %v472 = vrot.slane %v471, 2
        %v473 = vadd.f32 %v471, %v472
        %v474 = vrot.slane %v473, 1
        %v475 = vadd.f32 %v473, %v474
        %v476 = vrot.slane %v429, 4
        %v477 = vadd.f32 %v429, %v476
        %v478 = vrot.slane %v477, 2
        %v479 = vadd.f32 %v477, %v478
        %v480 = vrot.slane %v479, 1
        %v481 = vadd.f32 %v479, %v480
        %v482 = vrot.slane %v430, 4
        %v483 = vadd.f32 %v430, %v482
        %v484 = vrot.slane %v483, 2
        %v485 = vadd.f32 %v483, %v484
        %v486 = vrot.slane %v485, 1
        %v487 = vadd.f32 %v485, %v486
        %v488 = vrot.slane %v431, 4
        %v489 = vadd.f32 %v431, %v488
        %v490 = vrot.slane %v489, 2
        %v491 = vadd.f32 %v489, %v490
        %v492 = vrot.slane %v491, 1
        %v493 = vadd.f32 %v491, %v492
        %v494 = vrot.slane %v432, 4
        %v495 = vadd.f32 %v432, %v494
        %v496 = vrot.slane %v495, 2
        %v497 = vadd.f32 %v495, %v496
        %v498 = vrot.slane %v497, 1
        %v499 = vadd.f32 %v497, %v498
        %v500 = vrot.slane %v433, 4
        %v501 = vadd.f32 %v433, %v500
        %v502 = vrot.slane %v501, 2
        %v503 = vadd.f32 %v501, %v502
        %v504 = vrot.slane %v503, 1
        %v505 = vadd.f32 %v503, %v504
        %v506 = vrot.slane %v434, 4
        %v507 = vadd.f32 %v434, %v506
        %v508 = vrot.slane %v507, 2
        %v509 = vadd.f32 %v507, %v508
        %v510 = vrot.slane %v509, 1
        %v511 = vadd.f32 %v509, %v510
        %v512 = vrot.slane %v435, 4
        %v513 = vadd.f32 %v435, %v512
        %v514 = vrot.slane %v513, 2
        %v515 = vadd.f32 %v513, %v514
        %v516 = vrot.slane %v515, 1
        %v517 = vadd.f32 %v515, %v516
        %v518 = vrot.slane %v436, 4
        %v519 = vadd.f32 %v436, %v518
        %v520 = vrot.slane %v519, 2
        %v521 = vadd.f32 %v519, %v520
        %v522 = vrot.slane %v521, 1
        %v523 = vadd.f32 %v521, %v522
        %v524 = vrot.slane %v437, 4
        %v525 = vadd.f32 %v437, %v524
        %v526 = vrot.slane %v525, 2
        %v527 = vadd.f32 %v525, %v526
        %v528 = vrot.slane %v527, 1
        %v529 = vadd.f32 %v527, %v528
        %v530 = vrot.slane %v438, 4
        %v531 = vadd.f32 %v438, %v530
        %v532 = vrot.slane %v531, 2
        %v533 = vadd.f32 %v531, %v532
        %v534 = vrot.slane %v533, 1
        %v535 = vadd.f32 %v533, %v534
        %v536 = vrot.slane %v439, 4
        %v537 = vadd.f32 %v439, %v536
        %v538 = vrot.slane %v537, 2
        %v539 = vadd.f32 %v537, %v538
        %v540 = vrot.slane %v539, 1
        %v541 = vadd.f32 %v539, %v540
        %v542 = vrot.slane %v440, 4
        %v543 = vadd.f32 %v440, %v542
        %v544 = vrot.slane %v543, 2
        %v545 = vadd.f32 %v543, %v544
        %v546 = vrot.slane %v545, 1
        %v547 = vadd.f32 %v545, %v546
        %v548 = vrot.slane %v441, 4
        %v549 = vadd.f32 %v441, %v548
        %v550 = vrot.slane %v549, 2
        %v551 = vadd.f32 %v549, %v550
        %v552 = vrot.slane %v551, 1
        %v553 = vadd.f32 %v551, %v552
        %v554 = vrot.slane %v442, 4
        %v555 = vadd.f32 %v442, %v554
        %v556 = vrot.slane %v555, 2
        %v557 = vadd.f32 %v555, %v556
        %v558 = vrot.slane %v557, 1
        %v559 = vadd.f32 %v557, %v558
        %v560 = vrot.slane %v443, 4
        %v561 = vadd.f32 %v443, %v560
        %v562 = vrot.slane %v561, 2
        %v563 = vadd.f32 %v561, %v562
        %v564 = vrot.slane %v563, 1
        %v565 = vadd.f32 %v563, %v564
        %v566 = vrot.slane %v444, 4
        %v567 = vadd.f32 %v444, %v566
        %v568 = vrot.slane %v567, 2
        %v569 = vadd.f32 %v567, %v568
        %v570 = vrot.slane %v569, 1
        %v571 = vadd.f32 %v569, %v570
        %v572 = vrot.slane %v445, 4
        %v573 = vadd.f32 %v445, %v572
        %v574 = vrot.slane %v573, 2
        %v575 = vadd.f32 %v573, %v574
        %v576 = vrot.slane %v575, 1
        %v577 = vadd.f32 %v575, %v576
        %v578 = vrot.slane %v446, 4
        %v579 = vadd.f32 %v446, %v578
        %v580 = vrot.slane %v579, 2
        %v581 = vadd.f32 %v579, %v580
        %v582 = vrot.slane %v581, 1
        %v583 = vadd.f32 %v581, %v582
        %v584 = vrot.slane %v447, 4
        %v585 = vadd.f32 %v447, %v584
        %v586 = vrot.slane %v585, 2
        %v587 = vadd.f32 %v585, %v586
        %v588 = vrot.slane %v587, 1
        %v589 = vadd.f32 %v587, %v588
        %v590 = vrot.slane %v448, 4
        %v591 = vadd.f32 %v448, %v590
        %v592 = vrot.slane %v591, 2
        %v593 = vadd.f32 %v591, %v592
        %v594 = vrot.slane %v593, 1
        %v595 = vadd.f32 %v593, %v594
        %v596 = vrot.slane %v449, 4
        %v597 = vadd.f32 %v449, %v596
        %v598 = vrot.slane %v597, 2
        %v599 = vadd.f32 %v597, %v598
        %v600 = vrot.slane %v599, 1
        %v601 = vadd.f32 %v599, %v600
        %v602 = vrot.slane %v450, 4
        %v603 = vadd.f32 %v450, %v602
        %v604 = vrot.slane %v603, 2
        %v605 = vadd.f32 %v603, %v604
        %v606 = vrot.slane %v605, 1
        %v607 = vadd.f32 %v605, %v606
        %v608 = vrot.slane %v451, 4
        %v609 = vadd.f32 %v451, %v608
        %v610 = vrot.slane %v609, 2
        %v611 = vadd.f32 %v609, %v610
        %v612 = vrot.slane %v611, 1
        %v613 = vadd.f32 %v611, %v612
        %v614 = vrot.slane %v452, 4
        %v615 = vadd.f32 %v452, %v614
        %v616 = vrot.slane %v615, 2
        %v617 = vadd.f32 %v615, %v616
        %v618 = vrot.slane %v617, 1
        %v619 = vadd.f32 %v617, %v618
        %v620 = vrot.slane %v453, 4
        %v621 = vadd.f32 %v453, %v620
        %v622 = vrot.slane %v621, 2
        %v623 = vadd.f32 %v621, %v622
        %v624 = vrot.slane %v623, 1
        %v625 = vadd.f32 %v623, %v624
        %v626 = vrot.slane %v454, 4
        %v627 = vadd.f32 %v454, %v626
        %v628 = vrot.slane %v627, 2
        %v629 = vadd.f32 %v627, %v628
        %v630 = vrot.slane %v629, 1
        %v631 = vadd.f32 %v629, %v630
        %v632 = vrot.slane %v455, 4
        %v633 = vadd.f32 %v455, %v632
        %v634 = vrot.slane %v633, 2
        %v635 = vadd.f32 %v633, %v634
        %v636 = vrot.slane %v635, 1
        %v637 = vadd.f32 %v635, %v636
        %v638 = vrot.slane %v456, 4
        %v639 = vadd.f32 %v456, %v638
        %v640 = vrot.slane %v639, 2
        %v641 = vadd.f32 %v639, %v640
        %v642 = vrot.slane %v641, 1
        %v643 = vadd.f32 %v641, %v642
        %v644 = vrot.slane %v457, 4
        %v645 = vadd.f32 %v457, %v644
        %v646 = vrot.slane %v645, 2
        %v647 = vadd.f32 %v645, %v646
        %v648 = vrot.slane %v647, 1
        %v649 = vadd.f32 %v647, %v648
        %v650 = vpack.c.bf16 %v463, %v463
        %v651 = vpack.c.bf16 %v469, %v469
        %v652 = vpack.c.bf16 %v475, %v475
        %v653 = vpack.c.bf16 %v481, %v481
        %v654 = vpack.c.bf16 %v487, %v487
        %v655 = vpack.c.bf16 %v493, %v493
        %v656 = vpack.c.bf16 %v499, %v499
        %v657 = vpack.c.bf16 %v505, %v505
        %v658 = vpack.c.bf16 %v511, %v511
        %v659 = vpack.c.bf16 %v517, %v517
        %v660 = vpack.c.bf16 %v523, %v523
        %v661 = vpack.c.bf16 %v529, %v529
        %v662 = vpack.c.bf16 %v535, %v535
        %v663 = vpack.c.bf16 %v541, %v541
        %v664 = vpack.c.bf16 %v547, %v547
        %v665 = vpack.c.bf16 %v553, %v553
        %v666 = vpack.c.bf16 %v559, %v559
        %v667 = vpack.c.bf16 %v565, %v565
        %v668 = vpack.c.bf16 %v571, %v571
        %v669 = vpack.c.bf16 %v577, %v577
        %v670 = vpack.c.bf16 %v583, %v583
        %v671 = vpack.c.bf16 %v589, %v589
        %v672 = vpack.c.bf16 %v595, %v595
        %v673 = vpack.c.bf16 %v601, %v601
        %v674 = vpack.c.bf16 %v607, %v607
        %v675 = vpack.c.bf16 %v613, %v613
        %v676 = vpack.c.bf16 %v619, %v619
        %v677 = vpack.c.bf16 %v625, %v625
        %v678 = vpack.c.bf16 %v631, %v631
        %v679 = vpack.c.bf16 %v637, %v637
        %v680 = vpack.c.bf16 %v643, %v643
        %v681 = vpack.c.bf16 %v649, %v649
        %v682 = vld [vmem:[%s336] sm:$0xff]
        %v683 = vld [vmem:[%s336 + $0x8] sm:$0xff]
        %v684 = vld [vmem:[%s336 + $0x10] sm:$0xff]
        %v685 = vld [vmem:[%s336 + $0x18] sm:$0xff]
        %v686 = vld [vmem:[%s336 + $0x20] sm:$0xff]
        %v687 = vld [vmem:[%s336 + $0x28] sm:$0xff]
        %v688 = vld [vmem:[%s336 + $0x30] sm:$0xff]
        %v689 = vld [vmem:[%s336 + $0x38] sm:$0xff]
        %v690 = vld [vmem:[%s336 + $0x40] sm:$0xff]
        %v691 = vld [vmem:[%s336 + $0x48] sm:$0xff]
        %v692 = vld [vmem:[%s336 + $0x50] sm:$0xff]
        %v693 = vld [vmem:[%s336 + $0x58] sm:$0xff]
        %v694 = vld [vmem:[%s336 + $0x60] sm:$0xff]
        %v695 = vld [vmem:[%s336 + $0x68] sm:$0xff]
        %v696 = vld [vmem:[%s336 + $0x70] sm:$0xff]
        %v697 = vld [vmem:[%s336 + $0x78] sm:$0xff]
        %v698 = vld [vmem:[%s336 + $0x80] sm:$0xff]
        %v699 = vld [vmem:[%s336 + $0x88] sm:$0xff]
        %v700 = vld [vmem:[%s336 + $0x90] sm:$0xff]
        %v701 = vld [vmem:[%s336 + $0x98] sm:$0xff]
        %v702 = vld [vmem:[%s336 + $0xa0] sm:$0xff]
        %v703 = vld [vmem:[%s336 + $0xa8] sm:$0xff]
        %v704 = vld [vmem:[%s336 + $0xb0] sm:$0xff]
        %v705 = vld [vmem:[%s336 + $0xb8] sm:$0xff]
        %v706 = vld [vmem:[%s336 + $0xc0] sm:$0xff]
        %v707 = vld [vmem:[%s336 + $0xc8] sm:$0xff]
        %v708 = vld [vmem:[%s336 + $0xd0] sm:$0xff]
        %v709 = vld [vmem:[%s336 + $0xd8] sm:$0xff]
        %v710 = vld [vmem:[%s336 + $0xe0] sm:$0xff]
        %v711 = vld [vmem:[%s336 + $0xe8] sm:$0xff]
        %v712 = vld [vmem:[%s336 + $0xf0] sm:$0xff]
        %v713 = vld [vmem:[%s336 + $0xf8] sm:$0xff]
        %v714 = vld [vmem:[%s336 + $0x100] sm:$0xff]
        %v715 = vld [vmem:[%s336 + $0x108] sm:$0xff]
        %v716 = vld [vmem:[%s336 + $0x110] sm:$0xff]
        %v717 = vld [vmem:[%s336 + $0x118] sm:$0xff]
        %v718 = vld [vmem:[%s336 + $0x120] sm:$0xff]
        %v719 = vld [vmem:[%s336 + $0x128] sm:$0xff]
        %v720 = vld [vmem:[%s336 + $0x130] sm:$0xff]
        %v721 = vld [vmem:[%s336 + $0x138] sm:$0xff]
        %v722 = vld [vmem:[%s336 + $0x140] sm:$0xff]
        %v723 = vld [vmem:[%s336 + $0x148] sm:$0xff]
        %v724 = vld [vmem:[%s336 + $0x150] sm:$0xff]
        %v725 = vld [vmem:[%s336 + $0x158] sm:$0xff]
        %v726 = vld [vmem:[%s336 + $0x160] sm:$0xff]
        %v727 = vld [vmem:[%s336 + $0x168] sm:$0xff]
        %v728 = vld [vmem:[%s336 + $0x170] sm:$0xff]
        %v729 = vld [vmem:[%s336 + $0x178] sm:$0xff]
        %v730 = vld [vmem:[%s336 + $0x180] sm:$0xff]
        %v731 = vld [vmem:[%s336 + $0x188] sm:$0xff]
        %v732 = vld [vmem:[%s336 + $0x190] sm:$0xff]
        %v733 = vld [vmem:[%s336 + $0x198] sm:$0xff]
        %v734 = vld [vmem:[%s336 + $0x1a0] sm:$0xff]
        %v735 = vld [vmem:[%s336 + $0x1a8] sm:$0xff]
        %v736 = vld [vmem:[%s336 + $0x1b0] sm:$0xff]
        %v737 = vld [vmem:[%s336 + $0x1b8] sm:$0xff]
        %v738 = vld [vmem:[%s336 + $0x1c0] sm:$0xff]
        %v739 = vld [vmem:[%s336 + $0x1c8] sm:$0xff]
        %v740 = vld [vmem:[%s336 + $0x1d0] sm:$0xff]
        %v741 = vld [vmem:[%s336 + $0x1d8] sm:$0xff]
        %v742 = vld [vmem:[%s336 + $0x1e0] sm:$0xff]
        %v743 = vld [vmem:[%s336 + $0x1e8] sm:$0xff]
        %v744 = vld [vmem:[%s336 + $0x1f0] sm:$0xff]
        %v745 = vld [vmem:[%s336 + $0x1f8] sm:$0xff]
        %v746 = vld [vmem:[%s336 + $0x200] sm:$0xff]
        %v747 = vld [vmem:[%s336 + $0x208] sm:$0xff]
        %v748 = vld [vmem:[%s336 + $0x210] sm:$0xff]
        %v749 = vld [vmem:[%s336 + $0x218] sm:$0xff]
        %v750 = vld [vmem:[%s336 + $0x220] sm:$0xff]
        %v751 = vld [vmem:[%s336 + $0x228] sm:$0xff]
        %v752 = vld [vmem:[%s336 + $0x230] sm:$0xff]
        %v753 = vld [vmem:[%s336 + $0x238] sm:$0xff]
        %v754 = vld [vmem:[%s336 + $0x240] sm:$0xff]
        %v755 = vld [vmem:[%s336 + $0x248] sm:$0xff]
        %v756 = vld [vmem:[%s336 + $0x250] sm:$0xff]
        %v757 = vld [vmem:[%s336 + $0x258] sm:$0xff]
        %v758 = vld [vmem:[%s336 + $0x260] sm:$0xff]
        %v759 = vld [vmem:[%s336 + $0x268] sm:$0xff]
        %v760 = vld [vmem:[%s336 + $0x270] sm:$0xff]
        %v761 = vld [vmem:[%s336 + $0x278] sm:$0xff]
        %v762 = vld [vmem:[%s336 + $0x280] sm:$0xff]
        %v763 = vld [vmem:[%s336 + $0x288] sm:$0xff]
        %v764 = vld [vmem:[%s336 + $0x290] sm:$0xff]
        %v765 = vld [vmem:[%s336 + $0x298] sm:$0xff]
        %v766 = vld [vmem:[%s336 + $0x2a0] sm:$0xff]
        %v767 = vld [vmem:[%s336 + $0x2a8] sm:$0xff]
        %v768 = vld [vmem:[%s336 + $0x2b0] sm:$0xff]
        %v769 = vld [vmem:[%s336 + $0x2b8] sm:$0xff]
        %v770 = vld [vmem:[%s336 + $0x2c0] sm:$0xff]
        %v771 = vld [vmem:[%s336 + $0x2c8] sm:$0xff]
        %v772 = vld [vmem:[%s336 + $0x2d0] sm:$0xff]
        %v773 = vld [vmem:[%s336 + $0x2d8] sm:$0xff]
        %v774 = vld [vmem:[%s336 + $0x2e0] sm:$0xff]
        %v775 = vld [vmem:[%s336 + $0x2e8] sm:$0xff]
        %v776 = vld [vmem:[%s336 + $0x2f0] sm:$0xff]
        %v777 = vld [vmem:[%s336 + $0x2f8] sm:$0xff]
        %v778 = vld [vmem:[%s336 + $0x300] sm:$0xff]
        %v779 = vld [vmem:[%s336 + $0x308] sm:$0xff]
        %v780 = vld [vmem:[%s336 + $0x310] sm:$0xff]
        %v781 = vld [vmem:[%s336 + $0x318] sm:$0xff]
        %v782 = vld [vmem:[%s336 + $0x320] sm:$0xff]
        %v783 = vld [vmem:[%s336 + $0x328] sm:$0xff]
        %v784 = vld [vmem:[%s336 + $0x330] sm:$0xff]
        %v785 = vld [vmem:[%s336 + $0x338] sm:$0xff]
        %v786 = vld [vmem:[%s336 + $0x340] sm:$0xff]
        %v787 = vld [vmem:[%s336 + $0x348] sm:$0xff]
        %v788 = vld [vmem:[%s336 + $0x350] sm:$0xff]
        %v789 = vld [vmem:[%s336 + $0x358] sm:$0xff]
        %v790 = vld [vmem:[%s336 + $0x360] sm:$0xff]
        %v791 = vld [vmem:[%s336 + $0x368] sm:$0xff]
        %v792 = vld [vmem:[%s336 + $0x370] sm:$0xff]
        %v793 = vld [vmem:[%s336 + $0x378] sm:$0xff]
        %v794 = vld [vmem:[%s336 + $0x380] sm:$0xff]
        %v795 = vld [vmem:[%s336 + $0x388] sm:$0xff]
        %v796 = vld [vmem:[%s336 + $0x390] sm:$0xff]
        %v797 = vld [vmem:[%s336 + $0x398] sm:$0xff]
        %v798 = vld [vmem:[%s336 + $0x3a0] sm:$0xff]
        %v799 = vld [vmem:[%s336 + $0x3a8] sm:$0xff]
        %v800 = vld [vmem:[%s336 + $0x3b0] sm:$0xff]
        %v801 = vld [vmem:[%s336 + $0x3b8] sm:$0xff]
        %v802 = vld [vmem:[%s336 + $0x3c0] sm:$0xff]
        %v803 = vld [vmem:[%s336 + $0x3c8] sm:$0xff]
        %v804 = vld [vmem:[%s336 + $0x3d0] sm:$0xff]
        %v805 = vld [vmem:[%s336 + $0x3d8] sm:$0xff]
        %v806 = vld [vmem:[%s336 + $0x3e0] sm:$0xff]
        %v807 = vld [vmem:[%s336 + $0x3e8] sm:$0xff]
        %v808 = vld [vmem:[%s336 + $0x3f0] sm:$0xff]
        %v809 = vld [vmem:[%s336 + $0x3f8] sm:$0xff]
        %v810 = vld [vmem:[%s336 + $0x400] sm:$0xff]
        %v811 = vld [vmem:[%s336 + $0x408] sm:$0xff]
        %v812 = vld [vmem:[%s336 + $0x410] sm:$0xff]
        %v813 = vld [vmem:[%s336 + $0x418] sm:$0xff]
        %v814 = vld [vmem:[%s336 + $0x420] sm:$0xff]
        %v815 = vld [vmem:[%s336 + $0x428] sm:$0xff]
        %v816 = vld [vmem:[%s336 + $0x430] sm:$0xff]
        %v817 = vld [vmem:[%s336 + $0x438] sm:$0xff]
        %v818 = vld [vmem:[%s336 + $0x440] sm:$0xff]
        %v819 = vld [vmem:[%s336 + $0x448] sm:$0xff]
        %v820 = vld [vmem:[%s336 + $0x450] sm:$0xff]
        %v821 = vld [vmem:[%s336 + $0x458] sm:$0xff]
        %v822 = vld [vmem:[%s336 + $0x460] sm:$0xff]
        %v823 = vld [vmem:[%s336 + $0x468] sm:$0xff]
        %v824 = vld [vmem:[%s336 + $0x470] sm:$0xff]
        %v825 = vld [vmem:[%s336 + $0x478] sm:$0xff]
        %v826 = vld [vmem:[%s336 + $0x480] sm:$0xff]
        %v827 = vld [vmem:[%s336 + $0x488] sm:$0xff]
        %v828 = vld [vmem:[%s336 + $0x490] sm:$0xff]
        %v829 = vld [vmem:[%s336 + $0x498] sm:$0xff]
        %v830 = vld [vmem:[%s336 + $0x4a0] sm:$0xff]
        %v831 = vld [vmem:[%s336 + $0x4a8] sm:$0xff]
        %v832 = vld [vmem:[%s336 + $0x4b0] sm:$0xff]
        %v833 = vld [vmem:[%s336 + $0x4b8] sm:$0xff]
        %v834 = vld [vmem:[%s336 + $0x4c0] sm:$0xff]
        %v835 = vld [vmem:[%s336 + $0x4c8] sm:$0xff]
        %v836 = vld [vmem:[%s336 + $0x4d0] sm:$0xff]
        %v837 = vld [vmem:[%s336 + $0x4d8] sm:$0xff]
        %v838 = vld [vmem:[%s336 + $0x4e0] sm:$0xff]
        %v839 = vld [vmem:[%s336 + $0x4e8] sm:$0xff]
        %v840 = vld [vmem:[%s336 + $0x4f0] sm:$0xff]
        %v841 = vld [vmem:[%s336 + $0x4f8] sm:$0xff]
        %v842 = vld [vmem:[%s336 + $0x500] sm:$0xff]
        %v843 = vld [vmem:[%s336 + $0x508] sm:$0xff]
        %v844 = vld [vmem:[%s336 + $0x510] sm:$0xff]
        %v845 = vld [vmem:[%s336 + $0x518] sm:$0xff]
        %v846 = vld [vmem:[%s336 + $0x520] sm:$0xff]
        %v847 = vld [vmem:[%s336 + $0x528] sm:$0xff]
        %v848 = vld [vmem:[%s336 + $0x530] sm:$0xff]
        %v849 = vld [vmem:[%s336 + $0x538] sm:$0xff]
        %v850 = vld [vmem:[%s336 + $0x540] sm:$0xff]
        %v851 = vld [vmem:[%s336 + $0x548] sm:$0xff]
        %v852 = vld [vmem:[%s336 + $0x550] sm:$0xff]
        %v853 = vld [vmem:[%s336 + $0x558] sm:$0xff]
        %v854 = vld [vmem:[%s336 + $0x560] sm:$0xff]
        %v855 = vld [vmem:[%s336 + $0x568] sm:$0xff]
        %v856 = vld [vmem:[%s336 + $0x570] sm:$0xff]
        %v857 = vld [vmem:[%s336 + $0x578] sm:$0xff]
        %v858 = vld [vmem:[%s336 + $0x580] sm:$0xff]
        %v859 = vld [vmem:[%s336 + $0x588] sm:$0xff]
        %v860 = vld [vmem:[%s336 + $0x590] sm:$0xff]
        %v861 = vld [vmem:[%s336 + $0x598] sm:$0xff]
        %v862 = vld [vmem:[%s336 + $0x5a0] sm:$0xff]
        %v863 = vld [vmem:[%s336 + $0x5a8] sm:$0xff]
        %v864 = vld [vmem:[%s336 + $0x5b0] sm:$0xff]
        %v865 = vld [vmem:[%s336 + $0x5b8] sm:$0xff]
        %v866 = vld [vmem:[%s336 + $0x5c0] sm:$0xff]
        %v867 = vld [vmem:[%s336 + $0x5c8] sm:$0xff]
        %v868 = vld [vmem:[%s336 + $0x5d0] sm:$0xff]
        %v869 = vld [vmem:[%s336 + $0x5d8] sm:$0xff]
        %v870 = vld [vmem:[%s336 + $0x5e0] sm:$0xff]
        %v871 = vld [vmem:[%s336 + $0x5e8] sm:$0xff]
        %v872 = vld [vmem:[%s336 + $0x5f0] sm:$0xff]
        %v873 = vld [vmem:[%s336 + $0x5f8] sm:$0xff]
        %v874 = vld [vmem:[%s336 + $0x600] sm:$0xff]
        %v875 = vld [vmem:[%s336 + $0x608] sm:$0xff]
        %v876 = vld [vmem:[%s336 + $0x610] sm:$0xff]
        %v877 = vld [vmem:[%s336 + $0x618] sm:$0xff]
        %v878 = vld [vmem:[%s336 + $0x620] sm:$0xff]
        %v879 = vld [vmem:[%s336 + $0x628] sm:$0xff]
        %v880 = vld [vmem:[%s336 + $0x630] sm:$0xff]
        %v881 = vld [vmem:[%s336 + $0x638] sm:$0xff]
        %v882 = vld [vmem:[%s336 + $0x640] sm:$0xff]
        %v883 = vld [vmem:[%s336 + $0x648] sm:$0xff]
        %v884 = vld [vmem:[%s336 + $0x650] sm:$0xff]
        %v885 = vld [vmem:[%s336 + $0x658] sm:$0xff]
        %v886 = vld [vmem:[%s336 + $0x660] sm:$0xff]
        %v887 = vld [vmem:[%s336 + $0x668] sm:$0xff]
        %v888 = vld [vmem:[%s336 + $0x670] sm:$0xff]
        %v889 = vld [vmem:[%s336 + $0x678] sm:$0xff]
        %v890 = vld [vmem:[%s336 + $0x680] sm:$0xff]
        %v891 = vld [vmem:[%s336 + $0x688] sm:$0xff]
        %v892 = vld [vmem:[%s336 + $0x690] sm:$0xff]
        %v893 = vld [vmem:[%s336 + $0x698] sm:$0xff]
        %v894 = vld [vmem:[%s336 + $0x6a0] sm:$0xff]
        %v895 = vld [vmem:[%s336 + $0x6a8] sm:$0xff]
        %v896 = vld [vmem:[%s336 + $0x6b0] sm:$0xff]
        %v897 = vld [vmem:[%s336 + $0x6b8] sm:$0xff]
        %v898 = vld [vmem:[%s336 + $0x6c0] sm:$0xff]
        %v899 = vld [vmem:[%s336 + $0x6c8] sm:$0xff]
        %v900 = vld [vmem:[%s336 + $0x6d0] sm:$0xff]
        %v901 = vld [vmem:[%s336 + $0x6d8] sm:$0xff]
        %v902 = vld [vmem:[%s336 + $0x6e0] sm:$0xff]
        %v903 = vld [vmem:[%s336 + $0x6e8] sm:$0xff]
        %v904 = vld [vmem:[%s336 + $0x6f0] sm:$0xff]
        %v905 = vld [vmem:[%s336 + $0x6f8] sm:$0xff]
        %v906 = vld [vmem:[%s336 + $0x700] sm:$0xff]
        %v907 = vld [vmem:[%s336 + $0x708] sm:$0xff]
        %v908 = vld [vmem:[%s336 + $0x710] sm:$0xff]
        %v909 = vld [vmem:[%s336 + $0x718] sm:$0xff]
        %v910 = vld [vmem:[%s336 + $0x720] sm:$0xff]
        %v911 = vld [vmem:[%s336 + $0x728] sm:$0xff]
        %v912 = vld [vmem:[%s336 + $0x730] sm:$0xff]
        %v913 = vld [vmem:[%s336 + $0x738] sm:$0xff]
        %v914 = vld [vmem:[%s336 + $0x740] sm:$0xff]
        %v915 = vld [vmem:[%s336 + $0x748] sm:$0xff]
        %v916 = vld [vmem:[%s336 + $0x750] sm:$0xff]
        %v917 = vld [vmem:[%s336 + $0x758] sm:$0xff]
        %v918 = vld [vmem:[%s336 + $0x760] sm:$0xff]
        %v919 = vld [vmem:[%s336 + $0x768] sm:$0xff]
        %v920 = vld [vmem:[%s336 + $0x770] sm:$0xff]
        %v921 = vld [vmem:[%s336 + $0x778] sm:$0xff]
        %v922 = vld [vmem:[%s336 + $0x780] sm:$0xff]
        %v923 = vld [vmem:[%s336 + $0x788] sm:$0xff]
        %v924 = vld [vmem:[%s336 + $0x790] sm:$0xff]
        %v925 = vld [vmem:[%s336 + $0x798] sm:$0xff]
        %v926 = vld [vmem:[%s336 + $0x7a0] sm:$0xff]
        %v927 = vld [vmem:[%s336 + $0x7a8] sm:$0xff]
        %v928 = vld [vmem:[%s336 + $0x7b0] sm:$0xff]
        %v929 = vld [vmem:[%s336 + $0x7b8] sm:$0xff]
        %v930 = vld [vmem:[%s336 + $0x7c0] sm:$0xff]
        %v931 = vld [vmem:[%s336 + $0x7c8] sm:$0xff]
        %v932 = vld [vmem:[%s336 + $0x7d0] sm:$0xff]
        %v933 = vld [vmem:[%s336 + $0x7d8] sm:$0xff]
        %v934 = vld [vmem:[%s336 + $0x7e0] sm:$0xff]
        %v935 = vld [vmem:[%s336 + $0x7e8] sm:$0xff]
        %v936 = vld [vmem:[%s336 + $0x7f0] sm:$0xff]
        %v937 = vld [vmem:[%s336 + $0x7f8] sm:$0xff]
        %v938 = vld [vmem:[%s345] sm:$0x3]
        %v940 = vlaneseq
        %v941 = vshrl.u32 %v940, 7
        %v942 = vsub.s32 0, %v941
        %v943 = vrot.slane %v938, %v942
        %v944 = vlaneseq
        %v945 = vshrl.u32 %v944, 7
        %v946 = vsub.s32 1, %v945
        %v947 = vrot.slane %v938, %v946
        %v982 = vunpack.c.l.b16 %v650
        %v983 = vunpack.c.l.b16 %v651
        %v984 = vunpack.c.l.b16 %v652
        %v985 = vunpack.c.l.b16 %v653
        %v986 = vunpack.c.l.b16 %v654
        %v987 = vunpack.c.l.b16 %v655
        %v988 = vunpack.c.l.b16 %v656
        %v989 = vunpack.c.l.b16 %v657
        %v990 = vunpack.c.l.b16 %v658
        %v991 = vunpack.c.l.b16 %v659
        %v992 = vunpack.c.l.b16 %v660
        %v993 = vunpack.c.l.b16 %v661
        %v994 = vunpack.c.l.b16 %v662
        %v995 = vunpack.c.l.b16 %v663
        %v996 = vunpack.c.l.b16 %v664
        %v997 = vunpack.c.l.b16 %v665
        %v998 = vunpack.c.l.b16 %v666
        %v999 = vunpack.c.l.b16 %v667
        %v1000 = vunpack.c.l.b16 %v668
        %v1001 = vunpack.c.l.b16 %v669
        %v1002 = vunpack.c.l.b16 %v670
        %v1003 = vunpack.c.l.b16 %v671
        %v1004 = vunpack.c.l.b16 %v672
        %v1005 = vunpack.c.l.b16 %v673
        %v1006 = vunpack.c.l.b16 %v674
        %v1007 = vunpack.c.l.b16 %v675
        %v1008 = vunpack.c.l.b16 %v676
        %v1009 = vunpack.c.l.b16 %v677
        %v1010 = vunpack.c.l.b16 %v678
        %v1011 = vunpack.c.l.b16 %v679
        %v1012 = vunpack.c.l.b16 %v680
        %v1013 = vunpack.c.l.b16 %v681
        %vm1014 = vcmask 1041409
        %v1015 = vsel %vm1014, %v998, %v982
        %v1016 = vsel %vm1014, %v999, %v983
        %v1017 = vsel %vm1014, %v1000, %v984
        %v1018 = vsel %vm1014, %v1001, %v985
        %v1019 = vsel %vm1014, %v1002, %v986
        %v1020 = vsel %vm1014, %v1003, %v987
        %v1021 = vsel %vm1014, %v1004, %v988
        %v1022 = vsel %vm1014, %v1005, %v989
        %v1023 = vsel %vm1014, %v1006, %v990
        %v1024 = vsel %vm1014, %v1007, %v991
        %v1025 = vsel %vm1014, %v1008, %v992
        %v1026 = vsel %vm1014, %v1009, %v993
        %v1027 = vsel %vm1014, %v1010, %v994
        %v1028 = vsel %vm1014, %v1011, %v995
        %v1029 = vsel %vm1014, %v1012, %v996
        %v1030 = vsel %vm1014, %v1013, %v997
        %v1031 = vpack.c.b16 %v1015, %v1015
        %v1032 = vpack.c.b16 %v1016, %v1016
        %v1033 = vpack.c.b16 %v1017, %v1017
        %v1034 = vpack.c.b16 %v1018, %v1018
        %v1035 = vpack.c.b16 %v1019, %v1019
        %v1036 = vpack.c.b16 %v1020, %v1020
        %v1037 = vpack.c.b16 %v1021, %v1021
        %v1038 = vpack.c.b16 %v1022, %v1022
        %v1039 = vpack.c.b16 %v1023, %v1023
        %v1040 = vpack.c.b16 %v1024, %v1024
        %v1041 = vpack.c.b16 %v1025, %v1025
        %v1042 = vpack.c.b16 %v1026, %v1026
        %v1043 = vpack.c.b16 %v1027, %v1027
        %v1044 = vpack.c.b16 %v1028, %v1028
        %v1045 = vpack.c.b16 %v1029, %v1029
        %v1046 = vpack.c.b16 %v1030, %v1030
        %v1319 = vunpack.c.l.b16 %v682
        %v1320 = vunpack.c.h.b16 %v682
        %v1321 = vunpack.c.l.b16 %v683
        %v1322 = vunpack.c.h.b16 %v683
        %v1323 = vunpack.c.l.b16 %v684
        %v1324 = vunpack.c.h.b16 %v684
        %v1325 = vunpack.c.l.b16 %v685
        %v1326 = vunpack.c.h.b16 %v685
        %v1327 = vunpack.c.l.b16 %v686
        %v1328 = vunpack.c.h.b16 %v686
        %v1329 = vunpack.c.l.b16 %v687
        %v1330 = vunpack.c.h.b16 %v687
        %v1331 = vunpack.c.l.b16 %v688
        %v1332 = vunpack.c.h.b16 %v688
        %v1333 = vunpack.c.l.b16 %v689
        %v1334 = vunpack.c.h.b16 %v689
        %v1335 = vunpack.c.l.b16 %v690
        %v1336 = vunpack.c.h.b16 %v690
        %v1337 = vunpack.c.l.b16 %v691
        %v1338 = vunpack.c.h.b16 %v691
        %v1339 = vunpack.c.l.b16 %v692
        %v1340 = vunpack.c.h.b16 %v692
        %v1341 = vunpack.c.l.b16 %v693
        %v1342 = vunpack.c.h.b16 %v693
        %v1343 = vunpack.c.l.b16 %v694
        %v1344 = vunpack.c.h.b16 %v694
        %v1345 = vunpack.c.l.b16 %v695
        %v1346 = vunpack.c.h.b16 %v695
        %v1347 = vunpack.c.l.b16 %v696
        %v1348 = vunpack.c.h.b16 %v696
        %v1349 = vunpack.c.l.b16 %v697
        %v1350 = vunpack.c.h.b16 %v697
        %v1351 = vunpack.c.l.b16 %v698
        %v1352 = vunpack.c.h.b16 %v698
        %v1353 = vunpack.c.l.b16 %v699
        %v1354 = vunpack.c.h.b16 %v699
        %v1355 = vunpack.c.l.b16 %v700
        %v1356 = vunpack.c.h.b16 %v700
        %v1357 = vunpack.c.l.b16 %v701
        %v1358 = vunpack.c.h.b16 %v701
        %v1359 = vunpack.c.l.b16 %v702
        %v1360 = vunpack.c.h.b16 %v702
        %v1361 = vunpack.c.l.b16 %v703
        %v1362 = vunpack.c.h.b16 %v703
        %v1363 = vunpack.c.l.b16 %v704
        %v1364 = vunpack.c.h.b16 %v704
        %v1365 = vunpack.c.l.b16 %v705
        %v1366 = vunpack.c.h.b16 %v705
        %v1367 = vunpack.c.l.b16 %v706
        %v1368 = vunpack.c.h.b16 %v706
        %v1369 = vunpack.c.l.b16 %v707
        %v1370 = vunpack.c.h.b16 %v707
        %v1371 = vunpack.c.l.b16 %v708
        %v1372 = vunpack.c.h.b16 %v708
        %v1373 = vunpack.c.l.b16 %v709
        %v1374 = vunpack.c.h.b16 %v709
        %v1375 = vunpack.c.l.b16 %v710
        %v1376 = vunpack.c.h.b16 %v710
        %v1377 = vunpack.c.l.b16 %v711
        %v1378 = vunpack.c.h.b16 %v711
        %v1379 = vunpack.c.l.b16 %v712
        %v1380 = vunpack.c.h.b16 %v712
        %v1381 = vunpack.c.l.b16 %v713
        %v1382 = vunpack.c.h.b16 %v713
        %v1383 = vunpack.c.l.b16 %v714
        %v1384 = vunpack.c.h.b16 %v714
        %v1385 = vunpack.c.l.b16 %v715
        %v1386 = vunpack.c.h.b16 %v715
        %v1387 = vunpack.c.l.b16 %v716
        %v1388 = vunpack.c.h.b16 %v716
        %v1389 = vunpack.c.l.b16 %v717
        %v1390 = vunpack.c.h.b16 %v717
        %v1391 = vunpack.c.l.b16 %v718
        %v1392 = vunpack.c.h.b16 %v718
        %v1393 = vunpack.c.l.b16 %v719
        %v1394 = vunpack.c.h.b16 %v719
        %v1395 = vunpack.c.l.b16 %v720
        %v1396 = vunpack.c.h.b16 %v720
        %v1397 = vunpack.c.l.b16 %v721
        %v1398 = vunpack.c.h.b16 %v721
        %v1399 = vunpack.c.l.b16 %v722
        %v1400 = vunpack.c.h.b16 %v722
        %v1401 = vunpack.c.l.b16 %v723
        %v1402 = vunpack.c.h.b16 %v723
        %v1403 = vunpack.c.l.b16 %v724
        %v1404 = vunpack.c.h.b16 %v724
        %v1405 = vunpack.c.l.b16 %v725
        %v1406 = vunpack.c.h.b16 %v725
        %v1407 = vunpack.c.l.b16 %v726
        %v1408 = vunpack.c.h.b16 %v726
        %v1409 = vunpack.c.l.b16 %v727
        %v1410 = vunpack.c.h.b16 %v727
        %v1411 = vunpack.c.l.b16 %v728
        %v1412 = vunpack.c.h.b16 %v728
        %v1413 = vunpack.c.l.b16 %v729
        %v1414 = vunpack.c.h.b16 %v729
        %v1415 = vunpack.c.l.b16 %v730
        %v1416 = vunpack.c.h.b16 %v730
        %v1417 = vunpack.c.l.b16 %v731
        %v1418 = vunpack.c.h.b16 %v731
        %v1419 = vunpack.c.l.b16 %v732
        %v1420 = vunpack.c.h.b16 %v732
        %v1421 = vunpack.c.l.b16 %v733
        %v1422 = vunpack.c.h.b16 %v733
        %v1423 = vunpack.c.l.b16 %v734
        %v1424 = vunpack.c.h.b16 %v734
        %v1425 = vunpack.c.l.b16 %v735
        %v1426 = vunpack.c.h.b16 %v735
        %v1427 = vunpack.c.l.b16 %v736
        %v1428 = vunpack.c.h.b16 %v736
        %v1429 = vunpack.c.l.b16 %v737
        %v1430 = vunpack.c.h.b16 %v737
        %v1431 = vunpack.c.l.b16 %v738
        %v1432 = vunpack.c.h.b16 %v738
        %v1433 = vunpack.c.l.b16 %v739
        %v1434 = vunpack.c.h.b16 %v739
        %v1435 = vunpack.c.l.b16 %v740
        %v1436 = vunpack.c.h.b16 %v740
        %v1437 = vunpack.c.l.b16 %v741
        %v1438 = vunpack.c.h.b16 %v741
        %v1439 = vunpack.c.l.b16 %v742
        %v1440 = vunpack.c.h.b16 %v742
        %v1441 = vunpack.c.l.b16 %v743
        %v1442 = vunpack.c.h.b16 %v743
        %v1443 = vunpack.c.l.b16 %v744
        %v1444 = vunpack.c.h.b16 %v744
        %v1445 = vunpack.c.l.b16 %v745
        %v1446 = vunpack.c.h.b16 %v745
        %v1447 = vunpack.c.l.b16 %v746
        %v1448 = vunpack.c.h.b16 %v746
        %v1449 = vunpack.c.l.b16 %v747
        %v1450 = vunpack.c.h.b16 %v747
        %v1451 = vunpack.c.l.b16 %v748
        %v1452 = vunpack.c.h.b16 %v748
        %v1453 = vunpack.c.l.b16 %v749
        %v1454 = vunpack.c.h.b16 %v749
        %v1455 = vunpack.c.l.b16 %v750
        %v1456 = vunpack.c.h.b16 %v750
        %v1457 = vunpack.c.l.b16 %v751
        %v1458 = vunpack.c.h.b16 %v751
        %v1459 = vunpack.c.l.b16 %v752
        %v1460 = vunpack.c.h.b16 %v752
        %v1461 = vunpack.c.l.b16 %v753
        %v1462 = vunpack.c.h.b16 %v753
        %v1463 = vunpack.c.l.b16 %v754
        %v1464 = vunpack.c.h.b16 %v754
        %v1465 = vunpack.c.l.b16 %v755
        %v1466 = vunpack.c.h.b16 %v755
        %v1467 = vunpack.c.l.b16 %v756
        %v1468 = vunpack.c.h.b16 %v756
        %v1469 = vunpack.c.l.b16 %v757
        %v1470 = vunpack.c.h.b16 %v757
        %v1471 = vunpack.c.l.b16 %v758
        %v1472 = vunpack.c.h.b16 %v758
        %v1473 = vunpack.c.l.b16 %v759
        %v1474 = vunpack.c.h.b16 %v759
        %v1475 = vunpack.c.l.b16 %v760
        %v1476 = vunpack.c.h.b16 %v760
        %v1477 = vunpack.c.l.b16 %v761
        %v1478 = vunpack.c.h.b16 %v761
        %v1479 = vunpack.c.l.b16 %v762
        %v1480 = vunpack.c.h.b16 %v762
        %v1481 = vunpack.c.l.b16 %v763
        %v1482 = vunpack.c.h.b16 %v763
        %v1483 = vunpack.c.l.b16 %v764
        %v1484 = vunpack.c.h.b16 %v764
        %v1485 = vunpack.c.l.b16 %v765
        %v1486 = vunpack.c.h.b16 %v765
        %v1487 = vunpack.c.l.b16 %v766
        %v1488 = vunpack.c.h.b16 %v766
        %v1489 = vunpack.c.l.b16 %v767
        %v1490 = vunpack.c.h.b16 %v767
        %v1491 = vunpack.c.l.b16 %v768
        %v1492 = vunpack.c.h.b16 %v768
        %v1493 = vunpack.c.l.b16 %v769
        %v1494 = vunpack.c.h.b16 %v769
        %v1495 = vunpack.c.l.b16 %v770
        %v1496 = vunpack.c.h.b16 %v770
        %v1497 = vunpack.c.l.b16 %v771
        %v1498 = vunpack.c.h.b16 %v771
        %v1499 = vunpack.c.l.b16 %v772
        %v1500 = vunpack.c.h.b16 %v772
        %v1501 = vunpack.c.l.b16 %v773
        %v1502 = vunpack.c.h.b16 %v773
        %v1503 = vunpack.c.l.b16 %v774
        %v1504 = vunpack.c.h.b16 %v774
        %v1505 = vunpack.c.l.b16 %v775
        %v1506 = vunpack.c.h.b16 %v775
        %v1507 = vunpack.c.l.b16 %v776
        %v1508 = vunpack.c.h.b16 %v776
        %v1509 = vunpack.c.l.b16 %v777
        %v1510 = vunpack.c.h.b16 %v777
        %v1511 = vunpack.c.l.b16 %v778
        %v1512 = vunpack.c.h.b16 %v778
        %v1513 = vunpack.c.l.b16 %v779
        %v1514 = vunpack.c.h.b16 %v779
        %v1515 = vunpack.c.l.b16 %v780
        %v1516 = vunpack.c.h.b16 %v780
        %v1517 = vunpack.c.l.b16 %v781
        %v1518 = vunpack.c.h.b16 %v781
        %v1519 = vunpack.c.l.b16 %v782
        %v1520 = vunpack.c.h.b16 %v782
        %v1521 = vunpack.c.l.b16 %v783
        %v1522 = vunpack.c.h.b16 %v783
        %v1523 = vunpack.c.l.b16 %v784
        %v1524 = vunpack.c.h.b16 %v784
        %v1525 = vunpack.c.l.b16 %v785
        %v1526 = vunpack.c.h.b16 %v785
        %v1527 = vunpack.c.l.b16 %v786
        %v1528 = vunpack.c.h.b16 %v786
        %v1529 = vunpack.c.l.b16 %v787
        %v1530 = vunpack.c.h.b16 %v787
        %v1531 = vunpack.c.l.b16 %v788
        %v1532 = vunpack.c.h.b16 %v788
        %v1533 = vunpack.c.l.b16 %v789
        %v1534 = vunpack.c.h.b16 %v789
        %v1535 = vunpack.c.l.b16 %v790
        %v1536 = vunpack.c.h.b16 %v790
        %v1537 = vunpack.c.l.b16 %v791
        %v1538 = vunpack.c.h.b16 %v791
        %v1539 = vunpack.c.l.b16 %v792
        %v1540 = vunpack.c.h.b16 %v792
        %v1541 = vunpack.c.l.b16 %v793
        %v1542 = vunpack.c.h.b16 %v793
        %v1543 = vunpack.c.l.b16 %v794
        %v1544 = vunpack.c.h.b16 %v794
        %v1545 = vunpack.c.l.b16 %v795
        %v1546 = vunpack.c.h.b16 %v795
        %v1547 = vunpack.c.l.b16 %v796
        %v1548 = vunpack.c.h.b16 %v796
        %v1549 = vunpack.c.l.b16 %v797
        %v1550 = vunpack.c.h.b16 %v797
        %v1551 = vunpack.c.l.b16 %v798
        %v1552 = vunpack.c.h.b16 %v798
        %v1553 = vunpack.c.l.b16 %v799
        %v1554 = vunpack.c.h.b16 %v799
        %v1555 = vunpack.c.l.b16 %v800
        %v1556 = vunpack.c.h.b16 %v800
        %v1557 = vunpack.c.l.b16 %v801
        %v1558 = vunpack.c.h.b16 %v801
        %v1559 = vunpack.c.l.b16 %v802
        %v1560 = vunpack.c.h.b16 %v802
        %v1561 = vunpack.c.l.b16 %v803
        %v1562 = vunpack.c.h.b16 %v803
        %v1563 = vunpack.c.l.b16 %v804
        %v1564 = vunpack.c.h.b16 %v804
        %v1565 = vunpack.c.l.b16 %v805
        %v1566 = vunpack.c.h.b16 %v805
        %v1567 = vunpack.c.l.b16 %v806
        %v1568 = vunpack.c.h.b16 %v806
        %v1569 = vunpack.c.l.b16 %v807
        %v1570 = vunpack.c.h.b16 %v807
        %v1571 = vunpack.c.l.b16 %v808
        %v1572 = vunpack.c.h.b16 %v808
        %v1573 = vunpack.c.l.b16 %v809
        %v1574 = vunpack.c.h.b16 %v809
        %v1575 = vunpack.c.l.b16 %v810
        %v1576 = vunpack.c.h.b16 %v810
        %v1577 = vunpack.c.l.b16 %v811
        %v1578 = vunpack.c.h.b16 %v811
        %v1579 = vunpack.c.l.b16 %v812
        %v1580 = vunpack.c.h.b16 %v812
        %v1581 = vunpack.c.l.b16 %v813
        %v1582 = vunpack.c.h.b16 %v813
        %v1583 = vunpack.c.l.b16 %v814
        %v1584 = vunpack.c.h.b16 %v814
        %v1585 = vunpack.c.l.b16 %v815
        %v1586 = vunpack.c.h.b16 %v815
        %v1587 = vunpack.c.l.b16 %v816
        %v1588 = vunpack.c.h.b16 %v816
        %v1589 = vunpack.c.l.b16 %v817
        %v1590 = vunpack.c.h.b16 %v817
        %v1591 = vunpack.c.l.b16 %v818
        %v1592 = vunpack.c.h.b16 %v818
        %v1593 = vunpack.c.l.b16 %v819
        %v1594 = vunpack.c.h.b16 %v819
        %v1595 = vunpack.c.l.b16 %v820
        %v1596 = vunpack.c.h.b16 %v820
        %v1597 = vunpack.c.l.b16 %v821
        %v1598 = vunpack.c.h.b16 %v821
        %v1599 = vunpack.c.l.b16 %v822
        %v1600 = vunpack.c.h.b16 %v822
        %v1601 = vunpack.c.l.b16 %v823
        %v1602 = vunpack.c.h.b16 %v823
        %v1603 = vunpack.c.l.b16 %v824
        %v1604 = vunpack.c.h.b16 %v824
        %v1605 = vunpack.c.l.b16 %v825
        %v1606 = vunpack.c.h.b16 %v825
        %v1607 = vunpack.c.l.b16 %v826
        %v1608 = vunpack.c.h.b16 %v826
        %v1609 = vunpack.c.l.b16 %v827
        %v1610 = vunpack.c.h.b16 %v827
        %v1611 = vunpack.c.l.b16 %v828
        %v1612 = vunpack.c.h.b16 %v828
        %v1613 = vunpack.c.l.b16 %v829
        %v1614 = vunpack.c.h.b16 %v829
        %v1615 = vunpack.c.l.b16 %v830
        %v1616 = vunpack.c.h.b16 %v830
        %v1617 = vunpack.c.l.b16 %v831
        %v1618 = vunpack.c.h.b16 %v831
        %v1619 = vunpack.c.l.b16 %v832
        %v1620 = vunpack.c.h.b16 %v832
        %v1621 = vunpack.c.l.b16 %v833
        %v1622 = vunpack.c.h.b16 %v833
        %v1623 = vunpack.c.l.b16 %v834
        %v1624 = vunpack.c.h.b16 %v834
        %v1625 = vunpack.c.l.b16 %v835
        %v1626 = vunpack.c.h.b16 %v835
        %v1627 = vunpack.c.l.b16 %v836
        %v1628 = vunpack.c.h.b16 %v836
        %v1629 = vunpack.c.l.b16 %v837
        %v1630 = vunpack.c.h.b16 %v837
        %v1631 = vunpack.c.l.b16 %v838
        %v1632 = vunpack.c.h.b16 %v838
        %v1633 = vunpack.c.l.b16 %v839
        %v1634 = vunpack.c.h.b16 %v839
        %v1635 = vunpack.c.l.b16 %v840
        %v1636 = vunpack.c.h.b16 %v840
        %v1637 = vunpack.c.l.b16 %v841
        %v1638 = vunpack.c.h.b16 %v841
        %v1639 = vunpack.c.l.b16 %v842
        %v1640 = vunpack.c.h.b16 %v842
        %v1641 = vunpack.c.l.b16 %v843
        %v1642 = vunpack.c.h.b16 %v843
        %v1643 = vunpack.c.l.b16 %v844
        %v1644 = vunpack.c.h.b16 %v844
        %v1645 = vunpack.c.l.b16 %v845
        %v1646 = vunpack.c.h.b16 %v845
        %v1647 = vunpack.c.l.b16 %v846
        %v1648 = vunpack.c.h.b16 %v846
        %v1649 = vunpack.c.l.b16 %v847
        %v1650 = vunpack.c.h.b16 %v847
        %v1651 = vunpack.c.l.b16 %v848
        %v1652 = vunpack.c.h.b16 %v848
        %v1653 = vunpack.c.l.b16 %v849
        %v1654 = vunpack.c.h.b16 %v849
        %v1655 = vunpack.c.l.b16 %v850
        %v1656 = vunpack.c.h.b16 %v850
        %v1657 = vunpack.c.l.b16 %v851
        %v1658 = vunpack.c.h.b16 %v851
        %v1659 = vunpack.c.l.b16 %v852
        %v1660 = vunpack.c.h.b16 %v852
        %v1661 = vunpack.c.l.b16 %v853
        %v1662 = vunpack.c.h.b16 %v853
        %v1663 = vunpack.c.l.b16 %v854
        %v1664 = vunpack.c.h.b16 %v854
        %v1665 = vunpack.c.l.b16 %v855
        %v1666 = vunpack.c.h.b16 %v855
        %v1667 = vunpack.c.l.b16 %v856
        %v1668 = vunpack.c.h.b16 %v856
        %v1669 = vunpack.c.l.b16 %v857
        %v1670 = vunpack.c.h.b16 %v857
        %v1671 = vunpack.c.l.b16 %v858
        %v1672 = vunpack.c.h.b16 %v858
        %v1673 = vunpack.c.l.b16 %v859
        %v1674 = vunpack.c.h.b16 %v859
        %v1675 = vunpack.c.l.b16 %v860
        %v1676 = vunpack.c.h.b16 %v860
        %v1677 = vunpack.c.l.b16 %v861
        %v1678 = vunpack.c.h.b16 %v861
        %v1679 = vunpack.c.l.b16 %v862
        %v1680 = vunpack.c.h.b16 %v862
        %v1681 = vunpack.c.l.b16 %v863
        %v1682 = vunpack.c.h.b16 %v863
        %v1683 = vunpack.c.l.b16 %v864
        %v1684 = vunpack.c.h.b16 %v864
        %v1685 = vunpack.c.l.b16 %v865
        %v1686 = vunpack.c.h.b16 %v865
        %v1687 = vunpack.c.l.b16 %v866
        %v1688 = vunpack.c.h.b16 %v866
        %v1689 = vunpack.c.l.b16 %v867
        %v1690 = vunpack.c.h.b16 %v867
        %v1691 = vunpack.c.l.b16 %v868
        %v1692 = vunpack.c.h.b16 %v868
        %v1693 = vunpack.c.l.b16 %v869
        %v1694 = vunpack.c.h.b16 %v869
        %v1695 = vunpack.c.l.b16 %v870
        %v1696 = vunpack.c.h.b16 %v870
        %v1697 = vunpack.c.l.b16 %v871
        %v1698 = vunpack.c.h.b16 %v871
        %v1699 = vunpack.c.l.b16 %v872
        %v1700 = vunpack.c.h.b16 %v872
        %v1701 = vunpack.c.l.b16 %v873
        %v1702 = vunpack.c.h.b16 %v873
        %v1703 = vunpack.c.l.b16 %v874
        %v1704 = vunpack.c.h.b16 %v874
        %v1705 = vunpack.c.l.b16 %v875
        %v1706 = vunpack.c.h.b16 %v875
        %v1707 = vunpack.c.l.b16 %v876
        %v1708 = vunpack.c.h.b16 %v876
        %v1709 = vunpack.c.l.b16 %v877
        %v1710 = vunpack.c.h.b16 %v877
        %v1711 = vunpack.c.l.b16 %v878
        %v1712 = vunpack.c.h.b16 %v878
        %v1713 = vunpack.c.l.b16 %v879
        %v1714 = vunpack.c.h.b16 %v879
        %v1715 = vunpack.c.l.b16 %v880
        %v1716 = vunpack.c.h.b16 %v880
        %v1717 = vunpack.c.l.b16 %v881
        %v1718 = vunpack.c.h.b16 %v881
        %v1719 = vunpack.c.l.b16 %v882
        %v1720 = vunpack.c.h.b16 %v882
        %v1721 = vunpack.c.l.b16 %v883
        %v1722 = vunpack.c.h.b16 %v883
        %v1723 = vunpack.c.l.b16 %v884
        %v1724 = vunpack.c.h.b16 %v884
        %v1725 = vunpack.c.l.b16 %v885
        %v1726 = vunpack.c.h.b16 %v885
        %v1727 = vunpack.c.l.b16 %v886
        %v1728 = vunpack.c.h.b16 %v886
        %v1729 = vunpack.c.l.b16 %v887
        %v1730 = vunpack.c.h.b16 %v887
        %v1731 = vunpack.c.l.b16 %v888
        %v1732 = vunpack.c.h.b16 %v888
        %v1733 = vunpack.c.l.b16 %v889
        %v1734 = vunpack.c.h.b16 %v889
        %v1735 = vunpack.c.l.b16 %v890
        %v1736 = vunpack.c.h.b16 %v890
        %v1737 = vunpack.c.l.b16 %v891
        %v1738 = vunpack.c.h.b16 %v891
        %v1739 = vunpack.c.l.b16 %v892
        %v1740 = vunpack.c.h.b16 %v892
        %v1741 = vunpack.c.l.b16 %v893
        %v1742 = vunpack.c.h.b16 %v893
        %v1743 = vunpack.c.l.b16 %v894
        %v1744 = vunpack.c.h.b16 %v894
        %v1745 = vunpack.c.l.b16 %v895
        %v1746 = vunpack.c.h.b16 %v895
        %v1747 = vunpack.c.l.b16 %v896
        %v1748 = vunpack.c.h.b16 %v896
        %v1749 = vunpack.c.l.b16 %v897
        %v1750 = vunpack.c.h.b16 %v897
        %v1751 = vunpack.c.l.b16 %v898
        %v1752 = vunpack.c.h.b16 %v898
        %v1753 = vunpack.c.l.b16 %v899
        %v1754 = vunpack.c.h.b16 %v899
        %v1755 = vunpack.c.l.b16 %v900
        %v1756 = vunpack.c.h.b16 %v900
        %v1757 = vunpack.c.l.b16 %v901
        %v1758 = vunpack.c.h.b16 %v901
        %v1759 = vunpack.c.l.b16 %v902
        %v1760 = vunpack.c.h.b16 %v902
        %v1761 = vunpack.c.l.b16 %v903
        %v1762 = vunpack.c.h.b16 %v903
        %v1763 = vunpack.c.l.b16 %v904
        %v1764 = vunpack.c.h.b16 %v904
        %v1765 = vunpack.c.l.b16 %v905
        %v1766 = vunpack.c.h.b16 %v905
        %v1767 = vunpack.c.l.b16 %v906
        %v1768 = vunpack.c.h.b16 %v906
        %v1769 = vunpack.c.l.b16 %v907
        %v1770 = vunpack.c.h.b16 %v907
        %v1771 = vunpack.c.l.b16 %v908
        %v1772 = vunpack.c.h.b16 %v908
        %v1773 = vunpack.c.l.b16 %v909
        %v1774 = vunpack.c.h.b16 %v909
        %v1775 = vunpack.c.l.b16 %v910
        %v1776 = vunpack.c.h.b16 %v910
        %v1777 = vunpack.c.l.b16 %v911
        %v1778 = vunpack.c.h.b16 %v911
        %v1779 = vunpack.c.l.b16 %v912
        %v1780 = vunpack.c.h.b16 %v912
        %v1781 = vunpack.c.l.b16 %v913
        %v1782 = vunpack.c.h.b16 %v913
        %v1783 = vunpack.c.l.b16 %v914
        %v1784 = vunpack.c.h.b16 %v914
        %v1785 = vunpack.c.l.b16 %v915
        %v1786 = vunpack.c.h.b16 %v915
        %v1787 = vunpack.c.l.b16 %v916
        %v1788 = vunpack.c.h.b16 %v916
        %v1789 = vunpack.c.l.b16 %v917
        %v1790 = vunpack.c.h.b16 %v917
        %v1791 = vunpack.c.l.b16 %v918
        %v1792 = vunpack.c.h.b16 %v918
        %v1793 = vunpack.c.l.b16 %v919
        %v1794 = vunpack.c.h.b16 %v919
        %v1795 = vunpack.c.l.b16 %v920
        %v1796 = vunpack.c.h.b16 %v920
        %v1797 = vunpack.c.l.b16 %v921
        %v1798 = vunpack.c.h.b16 %v921
        %v1799 = vunpack.c.l.b16 %v922
        %v1800 = vunpack.c.h.b16 %v922
        %v1801 = vunpack.c.l.b16 %v923
        %v1802 = vunpack.c.h.b16 %v923
        %v1803 = vunpack.c.l.b16 %v924
        %v1804 = vunpack.c.h.b16 %v924
        %v1805 = vunpack.c.l.b16 %v925
        %v1806 = vunpack.c.h.b16 %v925
        %v1807 = vunpack.c.l.b16 %v926
        %v1808 = vunpack.c.h.b16 %v926
        %v1809 = vunpack.c.l.b16 %v927
        %v1810 = vunpack.c.h.b16 %v927
        %v1811 = vunpack.c.l.b16 %v928
        %v1812 = vunpack.c.h.b16 %v928
        %v1813 = vunpack.c.l.b16 %v929
        %v1814 = vunpack.c.h.b16 %v929
        %v1815 = vunpack.c.l.b16 %v930
        %v1816 = vunpack.c.h.b16 %v930
        %v1817 = vunpack.c.l.b16 %v931
        %v1818 = vunpack.c.h.b16 %v931
        %v1819 = vunpack.c.l.b16 %v932
        %v1820 = vunpack.c.h.b16 %v932
        %v1821 = vunpack.c.l.b16 %v933
        %v1822 = vunpack.c.h.b16 %v933
        %v1823 = vunpack.c.l.b16 %v934
        %v1824 = vunpack.c.h.b16 %v934
        %v1825 = vunpack.c.l.b16 %v935
        %v1826 = vunpack.c.h.b16 %v935
        %v1827 = vunpack.c.l.b16 %v936
        %v1828 = vunpack.c.h.b16 %v936
        %v1829 = vunpack.c.l.b16 %v937
        %v1830 = vunpack.c.h.b16 %v937
        %v1831 = vpack.c.b16 %v1321, %v1319
        %v1832 = vpack.c.b16 %v1322, %v1320
        %v1833 = vpack.c.b16 %v1325, %v1323
        %v1834 = vpack.c.b16 %v1326, %v1324
        %v1835 = vpack.c.b16 %v1329, %v1327
        %v1836 = vpack.c.b16 %v1330, %v1328
        %v1837 = vpack.c.b16 %v1333, %v1331
        %v1838 = vpack.c.b16 %v1334, %v1332
        %v1839 = vpack.c.b16 %v1337, %v1335
        %v1840 = vpack.c.b16 %v1338, %v1336
        %v1841 = vpack.c.b16 %v1341, %v1339
        %v1842 = vpack.c.b16 %v1342, %v1340
        %v1843 = vpack.c.b16 %v1345, %v1343
        %v1844 = vpack.c.b16 %v1346, %v1344
        %v1845 = vpack.c.b16 %v1349, %v1347
        %v1846 = vpack.c.b16 %v1350, %v1348
        %v1847 = vpack.c.b16 %v1353, %v1351
        %v1848 = vpack.c.b16 %v1354, %v1352
        %v1849 = vpack.c.b16 %v1357, %v1355
        %v1850 = vpack.c.b16 %v1358, %v1356
        %v1851 = vpack.c.b16 %v1361, %v1359
        %v1852 = vpack.c.b16 %v1362, %v1360
        %v1853 = vpack.c.b16 %v1365, %v1363
        %v1854 = vpack.c.b16 %v1366, %v1364
        %v1855 = vpack.c.b16 %v1369, %v1367
        %v1856 = vpack.c.b16 %v1370, %v1368
        %v1857 = vpack.c.b16 %v1373, %v1371
        %v1858 = vpack.c.b16 %v1374, %v1372
        %v1859 = vpack.c.b16 %v1377, %v1375
        %v1860 = vpack.c.b16 %v1378, %v1376
        %v1861 = vpack.c.b16 %v1381, %v1379
        %v1862 = vpack.c.b16 %v1382, %v1380
        %v1863 = vpack.c.b16 %v1385, %v1383
        %v1864 = vpack.c.b16 %v1386, %v1384
        %v1865 = vpack.c.b16 %v1389, %v1387
        %v1866 = vpack.c.b16 %v1390, %v1388
        %v1867 = vpack.c.b16 %v1393, %v1391
        %v1868 = vpack.c.b16 %v1394, %v1392
        %v1869 = vpack.c.b16 %v1397, %v1395
        %v1870 = vpack.c.b16 %v1398, %v1396
        %v1871 = vpack.c.b16 %v1401, %v1399
        %v1872 = vpack.c.b16 %v1402, %v1400
        %v1873 = vpack.c.b16 %v1405, %v1403
        %v1874 = vpack.c.b16 %v1406, %v1404
        %v1875 = vpack.c.b16 %v1409, %v1407
        %v1876 = vpack.c.b16 %v1410, %v1408
        %v1877 = vpack.c.b16 %v1413, %v1411
        %v1878 = vpack.c.b16 %v1414, %v1412
        %v1879 = vpack.c.b16 %v1417, %v1415
        %v1880 = vpack.c.b16 %v1418, %v1416
        %v1881 = vpack.c.b16 %v1421, %v1419
        %v1882 = vpack.c.b16 %v1422, %v1420
        %v1883 = vpack.c.b16 %v1425, %v1423
        %v1884 = vpack.c.b16 %v1426, %v1424
        %v1885 = vpack.c.b16 %v1429, %v1427
        %v1886 = vpack.c.b16 %v1430, %v1428
        %v1887 = vpack.c.b16 %v1433, %v1431
        %v1888 = vpack.c.b16 %v1434, %v1432
        %v1889 = vpack.c.b16 %v1437, %v1435
        %v1890 = vpack.c.b16 %v1438, %v1436
        %v1891 = vpack.c.b16 %v1441, %v1439
        %v1892 = vpack.c.b16 %v1442, %v1440
        %v1893 = vpack.c.b16 %v1445, %v1443
        %v1894 = vpack.c.b16 %v1446, %v1444
        %v1895 = vpack.c.b16 %v1449, %v1447
        %v1896 = vpack.c.b16 %v1450, %v1448
        %v1897 = vpack.c.b16 %v1453, %v1451
        %v1898 = vpack.c.b16 %v1454, %v1452
        %v1899 = vpack.c.b16 %v1457, %v1455
        %v1900 = vpack.c.b16 %v1458, %v1456
        %v1901 = vpack.c.b16 %v1461, %v1459
        %v1902 = vpack.c.b16 %v1462, %v1460
        %v1903 = vpack.c.b16 %v1465, %v1463
        %v1904 = vpack.c.b16 %v1466, %v1464
        %v1905 = vpack.c.b16 %v1469, %v1467
        %v1906 = vpack.c.b16 %v1470, %v1468
        %v1907 = vpack.c.b16 %v1473, %v1471
        %v1908 = vpack.c.b16 %v1474, %v1472
        %v1909 = vpack.c.b16 %v1477, %v1475
        %v1910 = vpack.c.b16 %v1478, %v1476
        %v1911 = vpack.c.b16 %v1481, %v1479
        %v1912 = vpack.c.b16 %v1482, %v1480
        %v1913 = vpack.c.b16 %v1485, %v1483
        %v1914 = vpack.c.b16 %v1486, %v1484
        %v1915 = vpack.c.b16 %v1489, %v1487
        %v1916 = vpack.c.b16 %v1490, %v1488
        %v1917 = vpack.c.b16 %v1493, %v1491
        %v1918 = vpack.c.b16 %v1494, %v1492
        %v1919 = vpack.c.b16 %v1497, %v1495
        %v1920 = vpack.c.b16 %v1498, %v1496
        %v1921 = vpack.c.b16 %v1501, %v1499
        %v1922 = vpack.c.b16 %v1502, %v1500
        %v1923 = vpack.c.b16 %v1505, %v1503
        %v1924 = vpack.c.b16 %v1506, %v1504
        %v1925 = vpack.c.b16 %v1509, %v1507
        %v1926 = vpack.c.b16 %v1510, %v1508
        %v1927 = vpack.c.b16 %v1513, %v1511
        %v1928 = vpack.c.b16 %v1514, %v1512
        %v1929 = vpack.c.b16 %v1517, %v1515
        %v1930 = vpack.c.b16 %v1518, %v1516
        %v1931 = vpack.c.b16 %v1521, %v1519
        %v1932 = vpack.c.b16 %v1522, %v1520
        %v1933 = vpack.c.b16 %v1525, %v1523
        %v1934 = vpack.c.b16 %v1526, %v1524
        %v1935 = vpack.c.b16 %v1529, %v1527
        %v1936 = vpack.c.b16 %v1530, %v1528
        %v1937 = vpack.c.b16 %v1533, %v1531
        %v1938 = vpack.c.b16 %v1534, %v1532
        %v1939 = vpack.c.b16 %v1537, %v1535
        %v1940 = vpack.c.b16 %v1538, %v1536
        %v1941 = vpack.c.b16 %v1541, %v1539
        %v1942 = vpack.c.b16 %v1542, %v1540
        %v1943 = vpack.c.b16 %v1545, %v1543
        %v1944 = vpack.c.b16 %v1546, %v1544
        %v1945 = vpack.c.b16 %v1549, %v1547
        %v1946 = vpack.c.b16 %v1550, %v1548
        %v1947 = vpack.c.b16 %v1553, %v1551
        %v1948 = vpack.c.b16 %v1554, %v1552
        %v1949 = vpack.c.b16 %v1557, %v1555
        %v1950 = vpack.c.b16 %v1558, %v1556
        %v1951 = vpack.c.b16 %v1561, %v1559
        %v1952 = vpack.c.b16 %v1562, %v1560
        %v1953 = vpack.c.b16 %v1565, %v1563
        %v1954 = vpack.c.b16 %v1566, %v1564
        %v1955 = vpack.c.b16 %v1569, %v1567
        %v1956 = vpack.c.b16 %v1570, %v1568
        %v1957 = vpack.c.b16 %v1573, %v1571
        %v1958 = vpack.c.b16 %v1574, %v1572
        %v1959 = vpack.c.b16 %v1577, %v1575
        %v1960 = vpack.c.b16 %v1578, %v1576
        %v1961 = vpack.c.b16 %v1581, %v1579
        %v1962 = vpack.c.b16 %v1582, %v1580
        %v1963 = vpack.c.b16 %v1585, %v1583
        %v1964 = vpack.c.b16 %v1586, %v1584
        %v1965 = vpack.c.b16 %v1589, %v1587
        %v1966 = vpack.c.b16 %v1590, %v1588
        %v1967 = vpack.c.b16 %v1593, %v1591
        %v1968 = vpack.c.b16 %v1594, %v1592
        %v1969 = vpack.c.b16 %v1597, %v1595
        %v1970 = vpack.c.b16 %v1598, %v1596
        %v1971 = vpack.c.b16 %v1601, %v1599
        %v1972 = vpack.c.b16 %v1602, %v1600
        %v1973 = vpack.c.b16 %v1605, %v1603
        %v1974 = vpack.c.b16 %v1606, %v1604
        %v1975 = vpack.c.b16 %v1609, %v1607
        %v1976 = vpack.c.b16 %v1610, %v1608
        %v1977 = vpack.c.b16 %v1613, %v1611
        %v1978 = vpack.c.b16 %v1614, %v1612
        %v1979 = vpack.c.b16 %v1617, %v1615
        %v1980 = vpack.c.b16 %v1618, %v1616
        %v1981 = vpack.c.b16 %v1621, %v1619
        %v1982 = vpack.c.b16 %v1622, %v1620
        %v1983 = vpack.c.b16 %v1625, %v1623
        %v1984 = vpack.c.b16 %v1626, %v1624
        %v1985 = vpack.c.b16 %v1629, %v1627
        %v1986 = vpack.c.b16 %v1630, %v1628
        %v1987 = vpack.c.b16 %v1633, %v1631
        %v1988 = vpack.c.b16 %v1634, %v1632
        %v1989 = vpack.c.b16 %v1637, %v1635
        %v1990 = vpack.c.b16 %v1638, %v1636
        %v1991 = vpack.c.b16 %v1641, %v1639
        %v1992 = vpack.c.b16 %v1642, %v1640
        %v1993 = vpack.c.b16 %v1645, %v1643
        %v1994 = vpack.c.b16 %v1646, %v1644
        %v1995 = vpack.c.b16 %v1649, %v1647
        %v1996 = vpack.c.b16 %v1650, %v1648
        %v1997 = vpack.c.b16 %v1653, %v1651
        %v1998 = vpack.c.b16 %v1654, %v1652
        %v1999 = vpack.c.b16 %v1657, %v1655
        %v2000 = vpack.c.b16 %v1658, %v1656
        %v2001 = vpack.c.b16 %v1661, %v1659
        %v2002 = vpack.c.b16 %v1662, %v1660
        %v2003 = vpack.c.b16 %v1665, %v1663
        %v2004 = vpack.c.b16 %v1666, %v1664
        %v2005 = vpack.c.b16 %v1669, %v1667
        %v2006 = vpack.c.b16 %v1670, %v1668
        %v2007 = vpack.c.b16 %v1673, %v1671
        %v2008 = vpack.c.b16 %v1674, %v1672
        %v2009 = vpack.c.b16 %v1677, %v1675
        %v2010 = vpack.c.b16 %v1678, %v1676
        %v2011 = vpack.c.b16 %v1681, %v1679
        %v2012 = vpack.c.b16 %v1682, %v1680
        %v2013 = vpack.c.b16 %v1685, %v1683
        %v2014 = vpack.c.b16 %v1686, %v1684
        %v2015 = vpack.c.b16 %v1689, %v1687
        %v2016 = vpack.c.b16 %v1690, %v1688
        %v2017 = vpack.c.b16 %v1693, %v1691
        %v2018 = vpack.c.b16 %v1694, %v1692
        %v2019 = vpack.c.b16 %v1697, %v1695
        %v2020 = vpack.c.b16 %v1698, %v1696
        %v2021 = vpack.c.b16 %v1701, %v1699
        %v2022 = vpack.c.b16 %v1702, %v1700
        %v2023 = vpack.c.b16 %v1705, %v1703
        %v2024 = vpack.c.b16 %v1706, %v1704
        %v2025 = vpack.c.b16 %v1709, %v1707
        %v2026 = vpack.c.b16 %v1710, %v1708
        %v2027 = vpack.c.b16 %v1713, %v1711
        %v2028 = vpack.c.b16 %v1714, %v1712
        %v2029 = vpack.c.b16 %v1717, %v1715
        %v2030 = vpack.c.b16 %v1718, %v1716
        %v2031 = vpack.c.b16 %v1721, %v1719
        %v2032 = vpack.c.b16 %v1722, %v1720
        %v2033 = vpack.c.b16 %v1725, %v1723
        %v2034 = vpack.c.b16 %v1726, %v1724
        %v2035 = vpack.c.b16 %v1729, %v1727
        %v2036 = vpack.c.b16 %v1730, %v1728
        %v2037 = vpack.c.b16 %v1733, %v1731
        %v2038 = vpack.c.b16 %v1734, %v1732
        %v2039 = vpack.c.b16 %v1737, %v1735
        %v2040 = vpack.c.b16 %v1738, %v1736
        %v2041 = vpack.c.b16 %v1741, %v1739
        %v2042 = vpack.c.b16 %v1742, %v1740
        %v2043 = vpack.c.b16 %v1745, %v1743
        %v2044 = vpack.c.b16 %v1746, %v1744
        %v2045 = vpack.c.b16 %v1749, %v1747
        %v2046 = vpack.c.b16 %v1750, %v1748
        %v2047 = vpack.c.b16 %v1753, %v1751
        %v2048 = vpack.c.b16 %v1754, %v1752
        %v2049 = vpack.c.b16 %v1757, %v1755
        %v2050 = vpack.c.b16 %v1758, %v1756
        %v2051 = vpack.c.b16 %v1761, %v1759
        %v2052 = vpack.c.b16 %v1762, %v1760
        %v2053 = vpack.c.b16 %v1765, %v1763
        %v2054 = vpack.c.b16 %v1766, %v1764
        %v2055 = vpack.c.b16 %v1769, %v1767
        %v2056 = vpack.c.b16 %v1770, %v1768
        %v2057 = vpack.c.b16 %v1773, %v1771
        %v2058 = vpack.c.b16 %v1774, %v1772
        %v2059 = vpack.c.b16 %v1777, %v1775
        %v2060 = vpack.c.b16 %v1778, %v1776
        %v2061 = vpack.c.b16 %v1781, %v1779
        %v2062 = vpack.c.b16 %v1782, %v1780
        %v2063 = vpack.c.b16 %v1785, %v1783
        %v2064 = vpack.c.b16 %v1786, %v1784
        %v2065 = vpack.c.b16 %v1789, %v1787
        %v2066 = vpack.c.b16 %v1790, %v1788
        %v2067 = vpack.c.b16 %v1793, %v1791
        %v2068 = vpack.c.b16 %v1794, %v1792
        %v2069 = vpack.c.b16 %v1797, %v1795
        %v2070 = vpack.c.b16 %v1798, %v1796
        %v2071 = vpack.c.b16 %v1801, %v1799
        %v2072 = vpack.c.b16 %v1802, %v1800
        %v2073 = vpack.c.b16 %v1805, %v1803
        %v2074 = vpack.c.b16 %v1806, %v1804
        %v2075 = vpack.c.b16 %v1809, %v1807
        %v2076 = vpack.c.b16 %v1810, %v1808
        %v2077 = vpack.c.b16 %v1813, %v1811
        %v2078 = vpack.c.b16 %v1814, %v1812
        %v2079 = vpack.c.b16 %v1817, %v1815
        %v2080 = vpack.c.b16 %v1818, %v1816
        %v2081 = vpack.c.b16 %v1821, %v1819
        %v2082 = vpack.c.b16 %v1822, %v1820
        %v2083 = vpack.c.b16 %v1825, %v1823
        %v2084 = vpack.c.b16 %v1826, %v1824
        %v2085 = vpack.c.b16 %v1829, %v1827
        %v2086 = vpack.c.b16 %v1830, %v1828
        %2343 = vmatprep.subr.bf16.mxu0 %v1832
        %2344 = vmatpush1.bf16.msra.mxu0 %v1831
        %2345 = vmatprep.subr.bf16.mxu0 %v1834
        %2346 = vmatpush1.bf16.msra.mxu0 %v1833
        %2347 = vmatprep.subr.bf16.mxu0 %v1836
        %2348 = vmatpush1.bf16.msra.mxu0 %v1835
        %2349 = vmatprep.subr.bf16.mxu0 %v1838
        %2350 = vmatpush1.bf16.msra.mxu0 %v1837
        %2351 = vmatprep.subr.bf16.mxu0 %v1840
        %2352 = vmatpush1.bf16.msra.mxu0 %v1839
        %2353 = vmatprep.subr.bf16.mxu0 %v1842
        %2354 = vmatpush1.bf16.msra.mxu0 %v1841
        %2355 = vmatprep.subr.bf16.mxu0 %v1844
        %2356 = vmatpush1.bf16.msra.mxu0 %v1843
        %2357 = vmatprep.subr.bf16.mxu0 %v1846
        %2358 = vmatpush1.bf16.msra.mxu0 %v1845
        %2359 = vmatprep.subr.bf16.mxu0 %v1848
        %2360 = vmatpush1.bf16.msra.mxu0 %v1847
        %2361 = vmatprep.subr.bf16.mxu0 %v1850
        %2362 = vmatpush1.bf16.msra.mxu0 %v1849
        %2363 = vmatprep.subr.bf16.mxu0 %v1852
        %2364 = vmatpush1.bf16.msra.mxu0 %v1851
        %2365 = vmatprep.subr.bf16.mxu0 %v1854
        %2366 = vmatpush1.bf16.msra.mxu0 %v1853
        %2367 = vmatprep.subr.bf16.mxu0 %v1856
        %2368 = vmatpush1.bf16.msra.mxu0 %v1855
        %2369 = vmatprep.subr.bf16.mxu0 %v1858
        %2370 = vmatpush1.bf16.msra.mxu0 %v1857
        %2371 = vmatprep.subr.bf16.mxu0 %v1860
        %2372 = vmatpush1.bf16.msra.mxu0 %v1859
        %2373 = vmatprep.subr.bf16.mxu0 %v1862
        %2374 = vmatpush1.bf16.msra.mxu0 %v1861
        %2375 = vmatprep.mubr.bf16.mxu0 %v1032
        %2376 = vmatmul.mubr.bf16.gmra.mrb[0].mxu0 %v1031
        %v2377 = vpop.f32.mrb[0].mxu0
        %v2378 = vadd.f32 %v943, %v2377
        %v2379 = vpop.f32.mrb[0].mxu0
        %v2380 = vadd.f32 %v947, %v2379
        %v2381 = vpop.f32.mrb[0].mxu0
        %v2382 = vpop.f32.mrb[0].mxu0
        %2383 = vdwg.mxu0
        %2384 = vmatprep.subr.bf16.mxu0 %v1864
        %2385 = vmatpush1.bf16.msra.mxu0 %v1863
        %2386 = vmatprep.subr.bf16.mxu0 %v1866
        %2387 = vmatpush1.bf16.msra.mxu0 %v1865
        %2388 = vmatprep.subr.bf16.mxu0 %v1868
        %2389 = vmatpush1.bf16.msra.mxu0 %v1867
        %2390 = vmatprep.subr.bf16.mxu0 %v1870
        %2391 = vmatpush1.bf16.msra.mxu0 %v1869
        %2392 = vmatprep.subr.bf16.mxu0 %v1872
        %2393 = vmatpush1.bf16.msra.mxu0 %v1871
        %2394 = vmatprep.subr.bf16.mxu0 %v1874
        %2395 = vmatpush1.bf16.msra.mxu0 %v1873
        %2396 = vmatprep.subr.bf16.mxu0 %v1876
        %2397 = vmatpush1.bf16.msra.mxu0 %v1875
        %2398 = vmatprep.subr.bf16.mxu0 %v1878
        %2399 = vmatpush1.bf16.msra.mxu0 %v1877
        %2400 = vmatprep.subr.bf16.mxu0 %v1880
        %2401 = vmatpush1.bf16.msra.mxu0 %v1879
        %2402 = vmatprep.subr.bf16.mxu0 %v1882
        %2403 = vmatpush1.bf16.msra.mxu0 %v1881
        %2404 = vmatprep.subr.bf16.mxu0 %v1884
        %2405 = vmatpush1.bf16.msra.mxu0 %v1883
        %2406 = vmatprep.subr.bf16.mxu0 %v1886
        %2407 = vmatpush1.bf16.msra.mxu0 %v1885
        %2408 = vmatprep.subr.bf16.mxu0 %v1888
        %2409 = vmatpush1.bf16.msra.mxu0 %v1887
        %2410 = vmatprep.subr.bf16.mxu0 %v1890
        %2411 = vmatpush1.bf16.msra.mxu0 %v1889
        %2412 = vmatprep.subr.bf16.mxu0 %v1892
        %2413 = vmatpush1.bf16.msra.mxu0 %v1891
        %2414 = vmatprep.subr.bf16.mxu0 %v1894
        %2415 = vmatpush1.bf16.msra.mxu0 %v1893
        %2416 = vmatprep.mubr.bf16.mxu0 %v1034
        %2417 = vmatmul.mubr.bf16.gmra.mrb[0].mxu0 %v1033
        %v2418 = vpop.f32.mrb[0].mxu0
        %v2419 = vadd.f32 %v2378, %v2418
        %v2420 = vpop.f32.mrb[0].mxu0
        %v2421 = vadd.f32 %v2380, %v2420
        %v2422 = vpop.f32.mrb[0].mxu0
        %v2423 = vpop.f32.mrb[0].mxu0
        %2424 = vdwg.mxu0
        %2425 = vmatprep.subr.bf16.mxu0 %v1896
        %2426 = vmatpush1.bf16.msra.mxu0 %v1895
        %2427 = vmatprep.subr.bf16.mxu0 %v1898
        %2428 = vmatpush1.bf16.msra.mxu0 %v1897
        %2429 = vmatprep.subr.bf16.mxu0 %v1900
        %2430 = vmatpush1.bf16.msra.mxu0 %v1899
        %2431 = vmatprep.subr.bf16.mxu0 %v1902
        %2432 = vmatpush1.bf16.msra.mxu0 %v1901
        %2433 = vmatprep.subr.bf16.mxu0 %v1904
        %2434 = vmatpush1.bf16.msra.mxu0 %v1903
        %2435 = vmatprep.subr.bf16.mxu0 %v1906
        %2436 = vmatpush1.bf16.msra.mxu0 %v1905
        %2437 = vmatprep.subr.bf16.mxu0 %v1908
        %2438 = vmatpush1.bf16.msra.mxu0 %v1907
        %2439 = vmatprep.subr.bf16.mxu0 %v1910
        %2440 = vmatpush1.bf16.msra.mxu0 %v1909
        %2441 = vmatprep.subr.bf16.mxu0 %v1912
        %2442 = vmatpush1.bf16.msra.mxu0 %v1911
        %2443 = vmatprep.subr.bf16.mxu0 %v1914
        %2444 = vmatpush1.bf16.msra.mxu0 %v1913
        %2445 = vmatprep.subr.bf16.mxu0 %v1916
        %2446 = vmatpush1.bf16.msra.mxu0 %v1915
        %2447 = vmatprep.subr.bf16.mxu0 %v1918
        %2448 = vmatpush1.bf16.msra.mxu0 %v1917
        %2449 = vmatprep.subr.bf16.mxu0 %v1920
        %2450 = vmatpush1.bf16.msra.mxu0 %v1919
        %2451 = vmatprep.subr.bf16.mxu0 %v1922
        %2452 = vmatpush1.bf16.msra.mxu0 %v1921
        %2453 = vmatprep.subr.bf16.mxu0 %v1924
        %2454 = vmatpush1.bf16.msra.mxu0 %v1923
        %2455 = vmatprep.subr.bf16.mxu0 %v1926
        %2456 = vmatpush1.bf16.msra.mxu0 %v1925
        %2457 = vmatprep.mubr.bf16.mxu0 %v1036
        %2458 = vmatmul.mubr.bf16.gmra.mrb[0].mxu0 %v1035
        %v2459 = vpop.f32.mrb[0].mxu0
        %v2460 = vadd.f32 %v2419, %v2459
        %v2461 = vpop.f32.mrb[0].mxu0
        %v2462 = vadd.f32 %v2421, %v2461
        %v2463 = vpop.f32.mrb[0].mxu0
        %v2464 = vpop.f32.mrb[0].mxu0
        %2465 = vdwg.mxu0
        %2466 = vmatprep.subr.bf16.mxu0 %v1928
        %2467 = vmatpush1.bf16.msra.mxu0 %v1927
        %2468 = vmatprep.subr.bf16.mxu0 %v1930
        %2469 = vmatpush1.bf16.msra.mxu0 %v1929
        %2470 = vmatprep.subr.bf16.mxu0 %v1932
        %2471 = vmatpush1.bf16.msra.mxu0 %v1931
        %2472 = vmatprep.subr.bf16.mxu0 %v1934
        %2473 = vmatpush1.bf16.msra.mxu0 %v1933
        %2474 = vmatprep.subr.bf16.mxu0 %v1936
        %2475 = vmatpush1.bf16.msra.mxu0 %v1935
        %2476 = vmatprep.subr.bf16.mxu0 %v1938
        %2477 = vmatpush1.bf16.msra.mxu0 %v1937
        %2478 = vmatprep.subr.bf16.mxu0 %v1940
        %2479 = vmatpush1.bf16.msra.mxu0 %v1939
        %2480 = vmatprep.subr.bf16.mxu0 %v1942
        %2481 = vmatpush1.bf16.msra.mxu0 %v1941
        %2482 = vmatprep.subr.bf16.mxu0 %v1944
        %2483 = vmatpush1.bf16.msra.mxu0 %v1943
        %2484 = vmatprep.subr.bf16.mxu0 %v1946
        %2485 = vmatpush1.bf16.msra.mxu0 %v1945
        %2486 = vmatprep.subr.bf16.mxu0 %v1948
        %2487 = vmatpush1.bf16.msra.mxu0 %v1947
        %2488 = vmatprep.subr.bf16.mxu0 %v1950
        %2489 = vmatpush1.bf16.msra.mxu0 %v1949
        %2490 = vmatprep.subr.bf16.mxu0 %v1952
        %2491 = vmatpush1.bf16.msra.mxu0 %v1951
        %2492 = vmatprep.subr.bf16.mxu0 %v1954
        %2493 = vmatpush1.bf16.msra.mxu0 %v1953
        %2494 = vmatprep.subr.bf16.mxu0 %v1956
        %2495 = vmatpush1.bf16.msra.mxu0 %v1955
        %2496 = vmatprep.subr.bf16.mxu0 %v1958
        %2497 = vmatpush1.bf16.msra.mxu0 %v1957
        %2498 = vmatprep.mubr.bf16.mxu0 %v1038
        %2499 = vmatmul.mubr.bf16.gmra.mrb[0].mxu0 %v1037
        %v2500 = vpop.f32.mrb[0].mxu0
        %v2501 = vadd.f32 %v2460, %v2500
        %v2502 = vpop.f32.mrb[0].mxu0
        %v2503 = vadd.f32 %v2462, %v2502
        %v2504 = vpop.f32.mrb[0].mxu0
        %v2505 = vpop.f32.mrb[0].mxu0
        %2506 = vdwg.mxu0
        %2507 = vmatprep.subr.bf16.mxu0 %v1960
        %2508 = vmatpush1.bf16.msra.mxu0 %v1959
        %2509 = vmatprep.subr.bf16.mxu0 %v1962
        %2510 = vmatpush1.bf16.msra.mxu0 %v1961
        %2511 = vmatprep.subr.bf16.mxu0 %v1964
        %2512 = vmatpush1.bf16.msra.mxu0 %v1963
        %2513 = vmatprep.subr.bf16.mxu0 %v1966
        %2514 = vmatpush1.bf16.msra.mxu0 %v1965
        %2515 = vmatprep.subr.bf16.mxu0 %v1968
        %2516 = vmatpush1.bf16.msra.mxu0 %v1967
        %2517 = vmatprep.subr.bf16.mxu0 %v1970
        %2518 = vmatpush1.bf16.msra.mxu0 %v1969
        %2519 = vmatprep.subr.bf16.mxu0 %v1972
        %2520 = vmatpush1.bf16.msra.mxu0 %v1971
        %2521 = vmatprep.subr.bf16.mxu0 %v1974
        %2522 = vmatpush1.bf16.msra.mxu0 %v1973
        %2523 = vmatprep.subr.bf16.mxu0 %v1976
        %2524 = vmatpush1.bf16.msra.mxu0 %v1975
        %2525 = vmatprep.subr.bf16.mxu0 %v1978
        %2526 = vmatpush1.bf16.msra.mxu0 %v1977
        %2527 = vmatprep.subr.bf16.mxu0 %v1980
        %2528 = vmatpush1.bf16.msra.mxu0 %v1979
        %2529 = vmatprep.subr.bf16.mxu0 %v1982
        %2530 = vmatpush1.bf16.msra.mxu0 %v1981
        %2531 = vmatprep.subr.bf16.mxu0 %v1984
        %2532 = vmatpush1.bf16.msra.mxu0 %v1983
        %2533 = vmatprep.subr.bf16.mxu0 %v1986
        %2534 = vmatpush1.bf16.msra.mxu0 %v1985
        %2535 = vmatprep.subr.bf16.mxu0 %v1988
        %2536 = vmatpush1.bf16.msra.mxu0 %v1987
        %2537 = vmatprep.subr.bf16.mxu0 %v1990
        %2538 = vmatpush1.bf16.msra.mxu0 %v1989
        %2539 = vmatprep.mubr.bf16.mxu0 %v1040
        %2540 = vmatmul.mubr.bf16.gmra.mrb[0].mxu0 %v1039
        %v2541 = vpop.f32.mrb[0].mxu0
        %v2542 = vadd.f32 %v2501, %v2541
        %v2543 = vpop.f32.mrb[0].mxu0
        %v2544 = vadd.f32 %v2503, %v2543
        %v2545 = vpop.f32.mrb[0].mxu0
        %v2546 = vpop.f32.mrb[0].mxu0
        %2547 = vdwg.mxu0
        %2548 = vmatprep.subr.bf16.mxu0 %v1992
        %2549 = vmatpush1.bf16.msra.mxu0 %v1991
        %2550 = vmatprep.subr.bf16.mxu0 %v1994
        %2551 = vmatpush1.bf16.msra.mxu0 %v1993
        %2552 = vmatprep.subr.bf16.mxu0 %v1996
        %2553 = vmatpush1.bf16.msra.mxu0 %v1995
        %2554 = vmatprep.subr.bf16.mxu0 %v1998
        %2555 = vmatpush1.bf16.msra.mxu0 %v1997
        %2556 = vmatprep.subr.bf16.mxu0 %v2000
        %2557 = vmatpush1.bf16.msra.mxu0 %v1999
        %2558 = vmatprep.subr.bf16.mxu0 %v2002
        %2559 = vmatpush1.bf16.msra.mxu0 %v2001
        %2560 = vmatprep.subr.bf16.mxu0 %v2004
        %2561 = vmatpush1.bf16.msra.mxu0 %v2003
        %2562 = vmatprep.subr.bf16.mxu0 %v2006
        %2563 = vmatpush1.bf16.msra.mxu0 %v2005
        %2564 = vmatprep.subr.bf16.mxu0 %v2008
        %2565 = vmatpush1.bf16.msra.mxu0 %v2007
        %2566 = vmatprep.subr.bf16.mxu0 %v2010
        %2567 = vmatpush1.bf16.msra.mxu0 %v2009
        %2568 = vmatprep.subr.bf16.mxu0 %v2012
        %2569 = vmatpush1.bf16.msra.mxu0 %v2011
        %2570 = vmatprep.subr.bf16.mxu0 %v2014
        %2571 = vmatpush1.bf16.msra.mxu0 %v2013
        %2572 = vmatprep.subr.bf16.mxu0 %v2016
        %2573 = vmatpush1.bf16.msra.mxu0 %v2015
        %2574 = vmatprep.subr.bf16.mxu0 %v2018
        %2575 = vmatpush1.bf16.msra.mxu0 %v2017
        %2576 = vmatprep.subr.bf16.mxu0 %v2020
        %2577 = vmatpush1.bf16.msra.mxu0 %v2019
        %2578 = vmatprep.subr.bf16.mxu0 %v2022
        %2579 = vmatpush1.bf16.msra.mxu0 %v2021
        %2580 = vmatprep.mubr.bf16.mxu0 %v1042
        %2581 = vmatmul.mubr.bf16.gmra.mrb[0].mxu0 %v1041
        %v2582 = vpop.f32.mrb[0].mxu0
        %v2583 = vadd.f32 %v2542, %v2582
        %v2584 = vpop.f32.mrb[0].mxu0
        %v2585 = vadd.f32 %v2544, %v2584
        %v2586 = vpop.f32.mrb[0].mxu0
        %v2587 = vpop.f32.mrb[0].mxu0
        %2588 = vdwg.mxu0
        %2589 = vmatprep.subr.bf16.mxu0 %v2024
        %2590 = vmatpush1.bf16.msra.mxu0 %v2023
        %2591 = vmatprep.subr.bf16.mxu0 %v2026
        %2592 = vmatpush1.bf16.msra.mxu0 %v2025
        %2593 = vmatprep.subr.bf16.mxu0 %v2028
        %2594 = vmatpush1.bf16.msra.mxu0 %v2027
        %2595 = vmatprep.subr.bf16.mxu0 %v2030
        %2596 = vmatpush1.bf16.msra.mxu0 %v2029
        %2597 = vmatprep.subr.bf16.mxu0 %v2032
        %2598 = vmatpush1.bf16.msra.mxu0 %v2031
        %2599 = vmatprep.subr.bf16.mxu0 %v2034
        %2600 = vmatpush1.bf16.msra.mxu0 %v2033
        %2601 = vmatprep.subr.bf16.mxu0 %v2036
        %2602 = vmatpush1.bf16.msra.mxu0 %v2035
        %2603 = vmatprep.subr.bf16.mxu0 %v2038
        %2604 = vmatpush1.bf16.msra.mxu0 %v2037
        %2605 = vmatprep.subr.bf16.mxu0 %v2040
        %2606 = vmatpush1.bf16.msra.mxu0 %v2039
        %2607 = vmatprep.subr.bf16.mxu0 %v2042
        %2608 = vmatpush1.bf16.msra.mxu0 %v2041
        %2609 = vmatprep.subr.bf16.mxu0 %v2044
        %2610 = vmatpush1.bf16.msra.mxu0 %v2043
        %2611 = vmatprep.subr.bf16.mxu0 %v2046
        %2612 = vmatpush1.bf16.msra.mxu0 %v2045
        %2613 = vmatprep.subr.bf16.mxu0 %v2048
        %2614 = vmatpush1.bf16.msra.mxu0 %v2047
        %2615 = vmatprep.subr.bf16.mxu0 %v2050
        %2616 = vmatpush1.bf16.msra.mxu0 %v2049
        %2617 = vmatprep.subr.bf16.mxu0 %v2052
        %2618 = vmatpush1.bf16.msra.mxu0 %v2051
        %2619 = vmatprep.subr.bf16.mxu0 %v2054
        %2620 = vmatpush1.bf16.msra.mxu0 %v2053
        %2621 = vmatprep.mubr.bf16.mxu0 %v1044
        %2622 = vmatmul.mubr.bf16.gmra.mrb[0].mxu0 %v1043
        %v2623 = vpop.f32.mrb[0].mxu0
        %v2624 = vadd.f32 %v2583, %v2623
        %v2625 = vpop.f32.mrb[0].mxu0
        %v2626 = vadd.f32 %v2585, %v2625
        %v2627 = vpop.f32.mrb[0].mxu0
        %v2628 = vpop.f32.mrb[0].mxu0
        %2629 = vdwg.mxu0
        %2630 = vmatprep.subr.bf16.mxu0 %v2056
        %2631 = vmatpush1.bf16.msra.mxu0 %v2055
        %2632 = vmatprep.subr.bf16.mxu0 %v2058
        %2633 = vmatpush1.bf16.msra.mxu0 %v2057
        %2634 = vmatprep.subr.bf16.mxu0 %v2060
        %2635 = vmatpush1.bf16.msra.mxu0 %v2059
        %2636 = vmatprep.subr.bf16.mxu0 %v2062
        %2637 = vmatpush1.bf16.msra.mxu0 %v2061
        %2638 = vmatprep.subr.bf16.mxu0 %v2064
        %2639 = vmatpush1.bf16.msra.mxu0 %v2063
        %2640 = vmatprep.subr.bf16.mxu0 %v2066
        %2641 = vmatpush1.bf16.msra.mxu0 %v2065
        %2642 = vmatprep.subr.bf16.mxu0 %v2068
        %2643 = vmatpush1.bf16.msra.mxu0 %v2067
        %2644 = vmatprep.subr.bf16.mxu0 %v2070
        %2645 = vmatpush1.bf16.msra.mxu0 %v2069
        %2646 = vmatprep.subr.bf16.mxu0 %v2072
        %2647 = vmatpush1.bf16.msra.mxu0 %v2071
        %2648 = vmatprep.subr.bf16.mxu0 %v2074
        %2649 = vmatpush1.bf16.msra.mxu0 %v2073
        %2650 = vmatprep.subr.bf16.mxu0 %v2076
        %2651 = vmatpush1.bf16.msra.mxu0 %v2075
        %2652 = vmatprep.subr.bf16.mxu0 %v2078
        %2653 = vmatpush1.bf16.msra.mxu0 %v2077
        %2654 = vmatprep.subr.bf16.mxu0 %v2080
        %2655 = vmatpush1.bf16.msra.mxu0 %v2079
        %2656 = vmatprep.subr.bf16.mxu0 %v2082
        %2657 = vmatpush1.bf16.msra.mxu0 %v2081
        %2658 = vmatprep.subr.bf16.mxu0 %v2084
        %2659 = vmatpush1.bf16.msra.mxu0 %v2083
        %2660 = vmatprep.subr.bf16.mxu0 %v2086
        %2661 = vmatpush1.bf16.msra.mxu0 %v2085
        %2662 = vmatprep.mubr.bf16.mxu0 %v1046
        %2663 = vmatmul.mubr.bf16.gmra.mrb[0].mxu0 %v1045
        %v2664 = vpop.f32.mrb[0].mxu0
        %v2665 = vadd.f32 %v2624, %v2664
        %v2666 = vpop.f32.mrb[0].mxu0
        %v2667 = vadd.f32 %v2626, %v2666
        %v2668 = vpop.f32.mrb[0].mxu0
        %v2669 = vpop.f32.mrb[0].mxu0
        %2670 = vdwg.mxu0
        %v2671 = vpack.c.bf16 %v2665, %v2665
        %v2672 = vpack.c.bf16 %v2667, %v2667
        %v2673 = vld [vmem:[%s354] sm:$0xf]
        %v2674 = vld [vmem:[%s354 + $0x4] sm:$0xf]
        %v2675 = vld [vmem:[%s354 + $0x8] sm:$0xf]
        %v2676 = vld [vmem:[%s354 + $0xc] sm:$0xf]
        %v2677 = vld [vmem:[%s354 + $0x10] sm:$0xf]
        %v2678 = vld [vmem:[%s354 + $0x14] sm:$0xf]
        %v2679 = vld [vmem:[%s354 + $0x18] sm:$0xf]
        %v2680 = vld [vmem:[%s354 + $0x1c] sm:$0xf]
        %v2681 = vld [vmem:[%s354 + $0x20] sm:$0xf]
        %v2682 = vld [vmem:[%s354 + $0x24] sm:$0xf]
        %v2683 = vld [vmem:[%s354 + $0x28] sm:$0xf]
        %v2684 = vld [vmem:[%s354 + $0x2c] sm:$0xf]
        %v2685 = vld [vmem:[%s354 + $0x30] sm:$0xf]
        %v2686 = vld [vmem:[%s354 + $0x34] sm:$0xf]
        %v2687 = vld [vmem:[%s354 + $0x38] sm:$0xf]
        %v2688 = vld [vmem:[%s354 + $0x3c] sm:$0xf]
        %v2689 = vld [vmem:[%s354 + $0x40] sm:$0xf]
        %v2690 = vld [vmem:[%s354 + $0x44] sm:$0xf]
        %v2691 = vld [vmem:[%s354 + $0x48] sm:$0xf]
        %v2692 = vld [vmem:[%s354 + $0x4c] sm:$0xf]
        %v2693 = vld [vmem:[%s354 + $0x50] sm:$0xf]
        %v2694 = vld [vmem:[%s354 + $0x54] sm:$0xf]
        %v2695 = vld [vmem:[%s354 + $0x58] sm:$0xf]
        %v2696 = vld [vmem:[%s354 + $0x5c] sm:$0xf]
        %v2697 = vld [vmem:[%s354 + $0x60] sm:$0xf]
        %v2698 = vld [vmem:[%s354 + $0x64] sm:$0xf]
        %v2699 = vld [vmem:[%s354 + $0x68] sm:$0xf]
        %v2700 = vld [vmem:[%s354 + $0x6c] sm:$0xf]
        %v2701 = vld [vmem:[%s354 + $0x70] sm:$0xf]
        %v2702 = vld [vmem:[%s354 + $0x74] sm:$0xf]
        %v2703 = vld [vmem:[%s354 + $0x78] sm:$0xf]
        %v2704 = vld [vmem:[%s354 + $0x7c] sm:$0xf]
        %v2705 = vld [vmem:[%s362] sm:$0x1]
        %v2707 = vlaneseq
        %v2708 = vshrl.u32 %v2707, 7
        %v2709 = vsub.s32 0, %v2708
        %v2710 = vrot.slane %v2705, %v2709
        %v2744 = vunpack.c.l.b16 %v2673
        %v2745 = vunpack.c.l.b16 %v2674
        %v2746 = vunpack.c.l.b16 %v2675
        %v2747 = vunpack.c.l.b16 %v2676
        %v2748 = vunpack.c.l.b16 %v2677
        %v2749 = vunpack.c.l.b16 %v2678
        %v2750 = vunpack.c.l.b16 %v2679
        %v2751 = vunpack.c.l.b16 %v2680
        %v2752 = vunpack.c.l.b16 %v2681
        %v2753 = vunpack.c.l.b16 %v2682
        %v2754 = vunpack.c.l.b16 %v2683
        %v2755 = vunpack.c.l.b16 %v2684
        %v2756 = vunpack.c.l.b16 %v2685
        %v2757 = vunpack.c.l.b16 %v2686
        %v2758 = vunpack.c.l.b16 %v2687
        %v2759 = vunpack.c.l.b16 %v2688
        %v2760 = vunpack.c.l.b16 %v2689
        %v2761 = vunpack.c.l.b16 %v2690
        %v2762 = vunpack.c.l.b16 %v2691
        %v2763 = vunpack.c.l.b16 %v2692
        %v2764 = vunpack.c.l.b16 %v2693
        %v2765 = vunpack.c.l.b16 %v2694
        %v2766 = vunpack.c.l.b16 %v2695
        %v2767 = vunpack.c.l.b16 %v2696
        %v2768 = vunpack.c.l.b16 %v2697
        %v2769 = vunpack.c.l.b16 %v2698
        %v2770 = vunpack.c.l.b16 %v2699
        %v2771 = vunpack.c.l.b16 %v2700
        %v2772 = vunpack.c.l.b16 %v2701
        %v2773 = vunpack.c.l.b16 %v2702
        %v2774 = vunpack.c.l.b16 %v2703
        %v2775 = vunpack.c.l.b16 %v2704
        %v2776 = vpack.c.b16 %v2745, %v2744
        %v2777 = vpack.c.b16 %v2747, %v2746
        %v2778 = vpack.c.b16 %v2749, %v2748
        %v2779 = vpack.c.b16 %v2751, %v2750
        %v2780 = vpack.c.b16 %v2753, %v2752
        %v2781 = vpack.c.b16 %v2755, %v2754
        %v2782 = vpack.c.b16 %v2757, %v2756
        %v2783 = vpack.c.b16 %v2759, %v2758
        %v2784 = vpack.c.b16 %v2761, %v2760
        %v2785 = vpack.c.b16 %v2763, %v2762
        %v2786 = vpack.c.b16 %v2765, %v2764
        %v2787 = vpack.c.b16 %v2767, %v2766
        %v2788 = vpack.c.b16 %v2769, %v2768
        %v2789 = vpack.c.b16 %v2771, %v2770
        %v2790 = vpack.c.b16 %v2773, %v2772
        %v2791 = vpack.c.b16 %v2775, %v2774
        %2808 = vmatprep.subr.bf16.mxu0 0
        %2809 = vmatpush1.bf16.msra.mxu0 %v2776
        %2810 = vmatprep.subr.bf16.mxu0 0
        %2811 = vmatpush1.bf16.msra.mxu0 %v2777
        %2812 = vmatprep.subr.bf16.mxu0 0
        %2813 = vmatpush1.bf16.msra.mxu0 %v2778
        %2814 = vmatprep.subr.bf16.mxu0 0
        %2815 = vmatpush1.bf16.msra.mxu0 %v2779
        %2816 = vmatprep.subr.bf16.mxu0 0
        %2817 = vmatpush1.bf16.msra.mxu0 %v2780
        %2818 = vmatprep.subr.bf16.mxu0 0
        %2819 = vmatpush1.bf16.msra.mxu0 %v2781
        %2820 = vmatprep.subr.bf16.mxu0 0
        %2821 = vmatpush1.bf16.msra.mxu0 %v2782
        %2822 = vmatprep.subr.bf16.mxu0 0
        %2823 = vmatpush1.bf16.msra.mxu0 %v2783
        %2824 = vmatprep.subr.bf16.mxu0 0
        %2825 = vmatpush1.bf16.msra.mxu0 %v2784
        %2826 = vmatprep.subr.bf16.mxu0 0
        %2827 = vmatpush1.bf16.msra.mxu0 %v2785
        %2828 = vmatprep.subr.bf16.mxu0 0
        %2829 = vmatpush1.bf16.msra.mxu0 %v2786
        %2830 = vmatprep.subr.bf16.mxu0 0
        %2831 = vmatpush1.bf16.msra.mxu0 %v2787
        %2832 = vmatprep.subr.bf16.mxu0 0
        %2833 = vmatpush1.bf16.msra.mxu0 %v2788
        %2834 = vmatprep.subr.bf16.mxu0 0
        %2835 = vmatpush1.bf16.msra.mxu0 %v2789
        %2836 = vmatprep.subr.bf16.mxu0 0
        %2837 = vmatpush1.bf16.msra.mxu0 %v2790
        %2838 = vmatprep.subr.bf16.mxu0 0
        %2839 = vmatpush1.bf16.msra.mxu0 %v2791
        %2840 = vmatprep.mubr.bf16.mxu0 %v2672
        %2841 = vmatmul.mubr.bf16.gmra.mrb[0].mxu0 %v2671
        %v2842 = vpop.f32.mrb[0].mxu0
        %v2843 = vadd.f32 %v2710, %v2842
        %v2844 = vpop.f32.mrb[0].mxu0
        %v2845 = vpop.f32.mrb[0].mxu0
        %v2846 = vpop.f32.mrb[0].mxu0
        %2847 = vdwg.mxu0
        %2848 = vst [vmem:[%s407] sm:$0x3] %v2843
        %s2849 = sand.u32 %s182, 1
        %s2850 = scalar_lea.sflag [#allocation4], %s2849
        %s2851 = sand.u32 %s182, 1
        %s2852 = smul.addr %s2851, 2
        %s2853 = scalar_lea.vmem [#allocation11], %s2852
        // Predicated region
        $region61: #{tpu_custom_call.1} parent=39 // pred_check
          %p2854 = pneg %p192
        $region62: #{tpu_custom_call.1} parent=39 // pred_check_branch
          %2856 = sbr.rel (%p2854) target = $region64
        $region63: #{tpu_custom_call.1} parent=39 // pred_region
          %s2858 = ssub.s32 32, 32
          %2859 = vsyncadd %s2850, %s2858
          %s2860 = sadd.s32 %s33, %s32
          %s2861 = smul.addr %s2860, 32
          %s2862 = scalar_lea.hbm %s5, %s2861
          %s2864 = sshll.u32 %s2853, 4
          %s2865 = int_to_ptr.vmem [resolvable:$true] %s2864
          %2867 = dma.vmem_to_hbm [thread:$0]  %s2865, 32, %s2862, %s2850
        $region64: #{tpu_custom_call.1} parent=39 // pred_fallthru
          _
      $region40: #{tpu_custom_call.1} parent=5 // pred_fallthru
        _
      %p2868 = scmp.le.s32.totalorder 2, %s23
      // Predicated region
      $region65: #{tpu_custom_call.1} parent=5 // pred_check
        %p2869 = pneg %p2868
      $region66: #{tpu_custom_call.1} parent=5 // pred_check_branch
        %2871 = sbr.rel (%p2869) target = $region68
      $region67: #{tpu_custom_call.1} parent=5 // pred_region
        %s2872 = ssub.s32 %s23, 2
        // Predicated region
        $region69: #{tpu_custom_call.1} parent=67 // pred_check
          %p2873 = pneg %p198
        $region70: #{tpu_custom_call.1} parent=67 // pred_check_branch
          %2875 = sbr.rel (%p2873) target = $region72
        $region71: #{tpu_custom_call.1} parent=67 // pred_region
          %s2876 = sand.u32 %s183, 1
          %s2877 = scalar_lea.sflag [#allocation4], %s2876
          %s2878 = sand.u32 %s183, 1
          %s2879 = smul.addr %s2878, 2
          %s2880 = scalar_lea.vmem [#allocation11], %s2879
          %2881 = dma.done %s2877, 32
        $region72: #{tpu_custom_call.1} parent=67 // pred_fallthru
          _
      $region68: #{tpu_custom_call.1} parent=5 // pred_fallthru
        _
    $region6: #{tpu_custom_call.1} parent=1 // loop_footer
      %s27 = sadd.s32 1, %s23
    $region7: #{tpu_custom_call.1} parent=1 // loop_footer_branch
      %22 = sbr.rel target = $region3
    $region8: #{tpu_custom_call.1} parent=1 // loop_exit
      _
    %2882 = vsyncpa [#allocation3], 1
    %s2883 = scalar_lea.sflag [#allocation3], 1
    %2884 = vsyncpa %s2883, 1
    %2885 = vsyncpa [#allocation6], 1
    %s2886 = scalar_lea.sflag [#allocation6], 1
    %2887 = vsyncpa %s2886, 1
    %2888 = vsyncpa [#allocation9], 1
    %s2889 = scalar_lea.sflag [#allocation9], 1
    %2890 = vsyncpa %s2889, 1
    %2891 = vsyncpa [#allocation4], 1
    %s2892 = scalar_lea.sflag [#allocation4], 1
    %2893 = vsyncpa %s2892, 1

</llo_original>
